<compile_context>
chip_gen: v6e
topology: v6e:2x2x1
jax: 0.10.0
libtpu: 0.0.40
codegen_flags: <defaults>
</compile_context>

<pallas_src>
import functools

import jax
import jax.numpy as jnp
from jax.experimental import pallas as pl
from jax.experimental.pallas import tpu as pltpu


def _round_up(x, m):
    return ((x + m - 1) // m) * m


# ------------------------------ Pallas kernel -------------------------------

def _conv_band_kernel(xb_ref, w_ref, b_ref, o_ref, lhs_ref, *,
                      K, S, tile_Ho, Wo_pad, Cin):
    """One (image, output-row-band) step of the KxK conv as a single fat matmul.

    xb_ref : (1, 1, S*S, tile_Hq, Wq, Cin) bf16  halo'd, stride-phase-decomposed band
    w_ref  : (K*K*Cin, Cp)                 bf16  im2col-ordered weights (Cout zero-padded)
    b_ref  : (1, Cp)                       f32   bias (zero-padded)
    o_ref  : (1, 1, tile_Ho*Wo_pad, Cp)    bf16  output band (lane-dense)
    lhs_ref: (tile_Ho*Wo_pad, K*K*Cin)     bf16  VMEM scratch: im2col LHS
    """
    M = tile_Ho * Wo_pad

    # --- assemble the im2col LHS in VMEM (bf16 throughout, no f32 round trip) ---
    for kh in range(K):
        for kw in range(K):
            t = (kh % S) * S + (kw % S)      # stride-phase index
            oh, ow = kh // S, kw // S        # unstrided offsets inside that phase
            tap = xb_ref[0, 0, t, oh:oh + tile_Ho, ow:ow + Wo_pad, :]
            c0 = (kh * K + kw) * Cin
            lhs_ref[:, c0:c0 + Cin] = tap.reshape(M, Cin)

    # --- one MXU contraction over K*K*Cin; chunk M only to bound live f32 vregs ---
    w = w_ref[...]
    bias = b_ref[...]
    MC = min(M, 256)
    for m0 in range(0, M, MC):
        mc = min(MC, M - m0)
        acc = jnp.dot(lhs_ref[m0:m0 + mc, :], w,
                      preferred_element_type=jnp.float32)
        o_ref[0, 0, m0:m0 + mc, :] = (acc + bias).astype(o_ref.dtype)


# -------------------------------- wrapper ------------------------------------

@functools.partial(jax.jit, static_argnames=("stride", "tile_ho"))
def conv_layer_forward(x, w, b, *, stride=1, tile_ho=None):
    """x: (N, Cin, H, W) NCHW; w: (Cout, Cin, K, K); b: (Cout,). Returns NCHW f32."""
    N, Cin, H, W = x.shape
    Cout, _, K, _ = w.shape
    S = int(stride)
    P = K // 2                                  # floor(kernel_size / 2), as in ConvLayer
    Ho = (H + 2 * P - K) // S + 1
    Wo = (W + 2 * P - K) // S + 1

    Wo_pad = _round_up(Wo, 16)                  # bf16 sublane pack -> free (Ho,Wo)->M merge
    if tile_ho is None:
        tile_ho = max(1, min(Ho, max(1, 1024 // Wo_pad)))
    tile_ho = min(int(tile_ho), Ho)
    Ho_pad = _round_up(Ho, tile_ho)
    n_bands = Ho_pad // tile_ho

    q = (K - 1) // S                            # extra rows/cols per stride-phase
    Hq_all = q + Ho_pad
    tile_Hq = q + tile_ho
    Wq = q + Wo_pad
    Cp = _round_up(Cout, 128)                   # lane-dense output channels
    M = tile_ho * Wo_pad

    # ---- glue: NCHW -> NHWC bf16, zero-pad, stride-phase decompose, band-stack ----
    x_nhwc = jnp.transpose(x, (0, 2, 3, 1)).astype(jnp.bfloat16)
    H_ext, W_ext = S * Hq_all, S * Wq
    pad_b = max(0, H_ext - (H + P))
    pad_r = max(0, W_ext - (W + P))
    x_pad = jnp.pad(x_nhwc, ((0, 0), (P, pad_b), (P, pad_r), (0, 0)))
    x_pad = x_pad[:, :H_ext, :W_ext, :]

    # phase decomposition: x_ph[n, th*S+tw, qh, qw, c] = x_pad[n, S*qh+th, S*qw+tw, c]
    x_ph = x_pad.reshape(N, Hq_all, S, Wq, S, Cin)
    x_ph = x_ph.transpose(0, 2, 4, 1, 3, 5).reshape(N, S * S, Hq_all, Wq, Cin)

    # halo'd row bands: band b needs phase-rows [b*tile_ho, b*tile_ho + tile_Hq)
    x_bands = jnp.stack(
        [x_ph[:, :, bb * tile_ho: bb * tile_ho + tile_Hq] for bb in range(n_bands)],
        axis=1)                                 # (N, n_bands, S*S, tile_Hq, Wq, Cin)

    # weights -> im2col order (K*K*Cin, Cp) bf16; bias -> (1, Cp) f32
    # row index (kh*K + kw)*Cin + c  <->  w[cout, c, kh, kw]
    w_flat = jnp.transpose(w, (2, 3, 1, 0)).reshape(K * K * Cin, Cout)
    w_flat = jnp.pad(w_flat, ((0, 0), (0, Cp - Cout))).astype(jnp.bfloat16)
    b_pad = jnp.pad(b.astype(jnp.float32), (0, Cp - Cout)).reshape(1, Cp)

    kernel = functools.partial(_conv_band_kernel, K=K, S=S, tile_Ho=tile_ho,
                               Wo_pad=Wo_pad, Cin=Cin)
    out_bands = pl.pallas_call(
        kernel,
        out_shape=jax.ShapeDtypeStruct((N, n_bands, M, Cp), jnp.bfloat16),
        grid=(N, n_bands),
        in_specs=[
            pl.BlockSpec((1, 1, S * S, tile_Hq, Wq, Cin),
                         lambda n, bnd: (n, bnd, 0, 0, 0, 0)),
            pl.BlockSpec((K * K * Cin, Cp), lambda n, bnd: (0, 0)),
            pl.BlockSpec((1, Cp), lambda n, bnd: (0, 0)),
        ],
        out_specs=pl.BlockSpec((1, 1, M, Cp), lambda n, bnd: (n, bnd, 0, 0)),
        scratch_shapes=[pltpu.VMEM((M, K * K * Cin), jnp.bfloat16)],
        compiler_params=pltpu.CompilerParams(
            dimension_semantics=("parallel", "parallel"),
            vmem_limit_bytes=48 * 1024 * 1024,   # blocks are resolution-independent; safe on v7x
        ),
    )(x_bands, w_flat, b_pad)

    out = out_bands.reshape(N, Ho_pad, Wo_pad, Cp)[:, :Ho, :Wo, :Cout]
    return jnp.transpose(out, (0, 3, 1, 2)).astype(jnp.float32)   # back to NCHW


# ------------------------------- reference -----------------------------------

def reference_forward(x, w, b, *, stride):
    K = w.shape[2]
    P = K // 2
    out = jax.lax.conv_general_dilated(
        x.astype(jnp.float32), w.astype(jnp.float32),
        window_strides=(stride, stride), padding=((P, P), (P, P)),
        dimension_numbers=("NCHW", "OIHW", "NCHW"),
        precision=jax.lax.Precision.HIGHEST)
    return out + b.astype(jnp.float32)[None, :, None, None]


# ---------------------------------- main --------------------------------------

if __name__ == "__main__":
    key = jax.random.PRNGKey(0)

    cases = [
        # (N, Cin, Cout, H,  W,  K, stride, tile_ho)
        (2, 4, 8, 16, 16, 3, 1, 8),    # ConvLayer(4, 8, 3, 1) on (2,4,16,16); 2 row bands
        (2, 4, 8, 16, 16, 3, 2, 8),    # strided variant (exercises the phase decomposition)
        (1, 4, 8, 13, 13, 3, 1, 8),    # odd spatial size (exercises Wo/Ho padding paths)
    ]

    for idx, (N, Cin, Cout, H, W, K, stride, tile_ho) in enumerate(cases):
        kx, kw_, kb = jax.random.split(jax.random.fold_in(key, idx), 3)
        x = jax.random.normal(kx, (N, Cin, H, W), dtype=jnp.float32)
        fan_in = Cin * K * K
        w = jax.random.uniform(kw_, (Cout, Cin, K, K), dtype=jnp.float32,
                               minval=-1.0, maxval=1.0) / jnp.sqrt(fan_in)
        b = jax.random.uniform(kb, (Cout,), dtype=jnp.float32,
                               minval=-1.0, maxval=1.0) / jnp.sqrt(fan_in)

        out = jax.block_until_ready(
            conv_layer_forward(x, w, b, stride=stride, tile_ho=tile_ho))

        P = K // 2
        Ho = (H + 2 * P - K) // stride + 1
        Wo = (W + 2 * P - K) // stride + 1
        assert out.shape == (N, Cout, Ho, Wo), (idx, out.shape)

        # Tight check: reference fed the same bf16-rounded operands and rounded
        # to the kernel's bf16 output dtype (isolates the im2col indexing /
        # kernel math from intentional bf16 quantization).
        xq = x.astype(jnp.bfloat16).astype(jnp.float32)
        wq = w.astype(jnp.bfloat16).astype(jnp.float32)
        ref_q = reference_forward(xq, wq, b, stride=stride)
        ref_q = ref_q.astype(jnp.bfloat16).astype(jnp.float32)
        err_q = float(jnp.max(jnp.abs(out - ref_q)))
        assert err_q < 2e-2, (idx, err_q)

        # Loose check against the full-f32 reference (bf16 operands/output,
        # f32 accumulation).
        ref = reference_forward(x, w, b, stride=stride)
        err = float(jnp.max(jnp.abs(out - ref)))
        assert err < 8e-2, (idx, err)

    print("KERNEL_OK")
</pallas_src>

<mosaic_0001>
module attributes {stable_mosaic.version = 11 : i64} {
  func.func @_conv_band_kernel(%arg0: i32, %arg1: i32, %arg2: memref<1x1x1x10x18x4xbf16, #tpu.memory_space<vmem>>, %arg3: memref<36x128xbf16, #tpu.memory_space<vmem>>, %arg4: memref<1x128xf32, #tpu.memory_space<vmem>>, %arg5: memref<1x1x128x128xbf16, #tpu.memory_space<vmem>>, %arg6: memref<128x36xbf16, #tpu.memory_space<vmem>>) attributes {dimension_semantics = [#tpu.dimension_semantics<parallel>, #tpu.dimension_semantics<parallel>], iteration_bounds = array<i64: 2, 2>, scalar_prefetch = 0 : i64, scratch_operands = 1 : i64, tpu.core_type = #tpu.core_type<tc>, window_params = [{transform_indices = @transform_0, window_bounds = array<i64: 1, 1, 1, 10, 18, 4>}, {pipeline_mode = #tpu.pipeline_mode<synchronous>, transform_indices = @transform_1, window_bounds = array<i64: 36, 128>}, {pipeline_mode = #tpu.pipeline_mode<synchronous>, transform_indices = @transform_2, window_bounds = array<i64: 1, 128>}, {transform_indices = @transform_3, window_bounds = array<i64: 1, 1, 128, 128>}]} {
    %c0 = arith.constant 0 : index
    %c0_0 = arith.constant 0 : index
    %c0_1 = arith.constant 0 : index
    %c0_2 = arith.constant 0 : index
    %c0_3 = arith.constant 0 : index
    %c0_4 = arith.constant 0 : index
    %0 = vector.load %arg2[%c0, %c0_0, %c0_1, %c0_2, %c0_3, %c0_4] : memref<1x1x1x10x18x4xbf16, #tpu.memory_space<vmem>>, vector<1x1x1x8x16x4xbf16>
    %1 = vector.shape_cast %0 : vector<1x1x1x8x16x4xbf16> to vector<8x16x4xbf16>
    %2 = vector.shape_cast %1 : vector<8x16x4xbf16> to vector<128x4xbf16>
    %c0_5 = arith.constant 0 : index
    %c0_6 = arith.constant 0 : index
    %3 = vector.load %arg6[%c0_5, %c0_6] : memref<128x36xbf16, #tpu.memory_space<vmem>>, vector<128x4xbf16>
    tpu.vector_store %arg6[%c0_5, %c0_6], %2 {strides = array<i32>} : memref<128x36xbf16, #tpu.memory_space<vmem>>, vector<128x4xbf16>,
    %c0_7 = arith.constant 0 : index
    %c0_8 = arith.constant 0 : index
    %c0_9 = arith.constant 0 : index
    %c0_10 = arith.constant 0 : index
    %c1 = arith.constant 1 : index
    %c0_11 = arith.constant 0 : index
    %4 = vector.load %arg2[%c0_7, %c0_8, %c0_9, %c0_10, %c1, %c0_11] : memref<1x1x1x10x18x4xbf16, #tpu.memory_space<vmem>>, vector<1x1x1x8x16x4xbf16>
    %5 = vector.shape_cast %4 : vector<1x1x1x8x16x4xbf16> to vector<8x16x4xbf16>
    %6 = vector.shape_cast %5 : vector<8x16x4xbf16> to vector<128x4xbf16>
    %c0_12 = arith.constant 0 : index
    %c4 = arith.constant 4 : index
    %7 = vector.load %arg6[%c0_12, %c4] : memref<128x36xbf16, #tpu.memory_space<vmem>>, vector<128x4xbf16>
    tpu.vector_store %arg6[%c0_12, %c4], %6 {strides = array<i32>} : memref<128x36xbf16, #tpu.memory_space<vmem>>, vector<128x4xbf16>,
    %c0_13 = arith.constant 0 : index
    %c0_14 = arith.constant 0 : index
    %c0_15 = arith.constant 0 : index
    %c0_16 = arith.constant 0 : index
    %c2 = arith.constant 2 : index
    %c0_17 = arith.constant 0 : index
    %8 = vector.load %arg2[%c0_13, %c0_14, %c0_15, %c0_16, %c2, %c0_17] : memref<1x1x1x10x18x4xbf16, #tpu.memory_space<vmem>>, vector<1x1x1x8x16x4xbf16>
    %9 = vector.shape_cast %8 : vector<1x1x1x8x16x4xbf16> to vector<8x16x4xbf16>
    %10 = vector.shape_cast %9 : vector<8x16x4xbf16> to vector<128x4xbf16>
    %c0_18 = arith.constant 0 : index
    %c8 = arith.constant 8 : index
    %11 = vector.load %arg6[%c0_18, %c8] : memref<128x36xbf16, #tpu.memory_space<vmem>>, vector<128x4xbf16>
    tpu.vector_store %arg6[%c0_18, %c8], %10 {strides = array<i32>} : memref<128x36xbf16, #tpu.memory_space<vmem>>, vector<128x4xbf16>,
    %c0_19 = arith.constant 0 : index
    %c0_20 = arith.constant 0 : index
    %c0_21 = arith.constant 0 : index
    %c1_22 = arith.constant 1 : index
    %c0_23 = arith.constant 0 : index
    %c0_24 = arith.constant 0 : index
    %12 = vector.load %arg2[%c0_19, %c0_20, %c0_21, %c1_22, %c0_23, %c0_24] : memref<1x1x1x10x18x4xbf16, #tpu.memory_space<vmem>>, vector<1x1x1x8x16x4xbf16>
    %13 = vector.shape_cast %12 : vector<1x1x1x8x16x4xbf16> to vector<8x16x4xbf16>
    %14 = vector.shape_cast %13 : vector<8x16x4xbf16> to vector<128x4xbf16>
    %c0_25 = arith.constant 0 : index
    %c12 = arith.constant 12 : index
    %15 = vector.load %arg6[%c0_25, %c12] : memref<128x36xbf16, #tpu.memory_space<vmem>>, vector<128x4xbf16>
    tpu.vector_store %arg6[%c0_25, %c12], %14 {strides = array<i32>} : memref<128x36xbf16, #tpu.memory_space<vmem>>, vector<128x4xbf16>,
    %c0_26 = arith.constant 0 : index
    %c0_27 = arith.constant 0 : index
    %c0_28 = arith.constant 0 : index
    %c1_29 = arith.constant 1 : index
    %c1_30 = arith.constant 1 : index
    %c0_31 = arith.constant 0 : index
    %16 = vector.load %arg2[%c0_26, %c0_27, %c0_28, %c1_29, %c1_30, %c0_31] : memref<1x1x1x10x18x4xbf16, #tpu.memory_space<vmem>>, vector<1x1x1x8x16x4xbf16>
    %17 = vector.shape_cast %16 : vector<1x1x1x8x16x4xbf16> to vector<8x16x4xbf16>
    %18 = vector.shape_cast %17 : vector<8x16x4xbf16> to vector<128x4xbf16>
    %c0_32 = arith.constant 0 : index
    %c16 = arith.constant 16 : index
    %19 = vector.load %arg6[%c0_32, %c16] : memref<128x36xbf16, #tpu.memory_space<vmem>>, vector<128x4xbf16>
    tpu.vector_store %arg6[%c0_32, %c16], %18 {strides = array<i32>} : memref<128x36xbf16, #tpu.memory_space<vmem>>, vector<128x4xbf16>,
    %c0_33 = arith.constant 0 : index
    %c0_34 = arith.constant 0 : index
    %c0_35 = arith.constant 0 : index
    %c1_36 = arith.constant 1 : index
    %c2_37 = arith.constant 2 : index
    %c0_38 = arith.constant 0 : index
    %20 = vector.load %arg2[%c0_33, %c0_34, %c0_35, %c1_36, %c2_37, %c0_38] : memref<1x1x1x10x18x4xbf16, #tpu.memory_space<vmem>>, vector<1x1x1x8x16x4xbf16>
    %21 = vector.shape_cast %20 : vector<1x1x1x8x16x4xbf16> to vector<8x16x4xbf16>
    %22 = vector.shape_cast %21 : vector<8x16x4xbf16> to vector<128x4xbf16>
    %c0_39 = arith.constant 0 : index
    %c20 = arith.constant 20 : index
    %23 = vector.load %arg6[%c0_39, %c20] : memref<128x36xbf16, #tpu.memory_space<vmem>>, vector<128x4xbf16>
    tpu.vector_store %arg6[%c0_39, %c20], %22 {strides = array<i32>} : memref<128x36xbf16, #tpu.memory_space<vmem>>, vector<128x4xbf16>,
    %c0_40 = arith.constant 0 : index
    %c0_41 = arith.constant 0 : index
    %c0_42 = arith.constant 0 : index
    %c2_43 = arith.constant 2 : index
    %c0_44 = arith.constant 0 : index
    %c0_45 = arith.constant 0 : index
    %24 = vector.load %arg2[%c0_40, %c0_41, %c0_42, %c2_43, %c0_44, %c0_45] : memref<1x1x1x10x18x4xbf16, #tpu.memory_space<vmem>>, vector<1x1x1x8x16x4xbf16>
    %25 = vector.shape_cast %24 : vector<1x1x1x8x16x4xbf16> to vector<8x16x4xbf16>
    %26 = vector.shape_cast %25 : vector<8x16x4xbf16> to vector<128x4xbf16>
    %c0_46 = arith.constant 0 : index
    %c24 = arith.constant 24 : index
    %27 = vector.load %arg6[%c0_46, %c24] : memref<128x36xbf16, #tpu.memory_space<vmem>>, vector<128x4xbf16>
    tpu.vector_store %arg6[%c0_46, %c24], %26 {strides = array<i32>} : memref<128x36xbf16, #tpu.memory_space<vmem>>, vector<128x4xbf16>,
    %c0_47 = arith.constant 0 : index
    %c0_48 = arith.constant 0 : index
    %c0_49 = arith.constant 0 : index
    %c2_50 = arith.constant 2 : index
    %c1_51 = arith.constant 1 : index
    %c0_52 = arith.constant 0 : index
    %28 = vector.load %arg2[%c0_47, %c0_48, %c0_49, %c2_50, %c1_51, %c0_52] : memref<1x1x1x10x18x4xbf16, #tpu.memory_space<vmem>>, vector<1x1x1x8x16x4xbf16>
    %29 = vector.shape_cast %28 : vector<1x1x1x8x16x4xbf16> to vector<8x16x4xbf16>
    %30 = vector.shape_cast %29 : vector<8x16x4xbf16> to vector<128x4xbf16>
    %c0_53 = arith.constant 0 : index
    %c28 = arith.constant 28 : index
    %31 = vector.load %arg6[%c0_53, %c28] : memref<128x36xbf16, #tpu.memory_space<vmem>>, vector<128x4xbf16>
    tpu.vector_store %arg6[%c0_53, %c28], %30 {strides = array<i32>} : memref<128x36xbf16, #tpu.memory_space<vmem>>, vector<128x4xbf16>,
    %c0_54 = arith.constant 0 : index
    %c0_55 = arith.constant 0 : index
    %c0_56 = arith.constant 0 : index
    %c2_57 = arith.constant 2 : index
    %c2_58 = arith.constant 2 : index
    %c0_59 = arith.constant 0 : index
    %32 = vector.load %arg2[%c0_54, %c0_55, %c0_56, %c2_57, %c2_58, %c0_59] : memref<1x1x1x10x18x4xbf16, #tpu.memory_space<vmem>>, vector<1x1x1x8x16x4xbf16>
    %33 = vector.shape_cast %32 : vector<1x1x1x8x16x4xbf16> to vector<8x16x4xbf16>
    %34 = vector.shape_cast %33 : vector<8x16x4xbf16> to vector<128x4xbf16>
    %c0_60 = arith.constant 0 : index
    %c32 = arith.constant 32 : index
    %35 = vector.load %arg6[%c0_60, %c32] : memref<128x36xbf16, #tpu.memory_space<vmem>>, vector<128x4xbf16>
    tpu.vector_store %arg6[%c0_60, %c32], %34 {strides = array<i32>} : memref<128x36xbf16, #tpu.memory_space<vmem>>, vector<128x4xbf16>,
    %c0_61 = arith.constant 0 : index
    %c0_62 = arith.constant 0 : index
    %36 = vector.load %arg3[%c0_61, %c0_62] : memref<36x128xbf16, #tpu.memory_space<vmem>>, vector<36x128xbf16>
    %c0_63 = arith.constant 0 : index
    %c0_64 = arith.constant 0 : index
    %37 = vector.load %arg4[%c0_63, %c0_64] : memref<1x128xf32, #tpu.memory_space<vmem>>, vector<1x128xf32>
    %c0_65 = arith.constant 0 : index
    %c0_66 = arith.constant 0 : index
    %38 = vector.load %arg6[%c0_65, %c0_66] : memref<128x36xbf16, #tpu.memory_space<vmem>>, vector<128x36xbf16>
    %cst = arith.constant dense<0.000000e+00> : vector<128x128xf32>
    %39 = tpu.matmul %38, %36, %cst {dimension_numbers = #tpu.dot_dimension_numbers<[1], [0], [0], [1], [0, 0, 1, 1], [], []>} : vector<128x36xbf16>, vector<36x128xbf16>, vector<128x128xf32> -> vector<128x128xf32>
    %40 = vector.broadcast %37 : vector<1x128xf32> to vector<128x128xf32>
    %41 = arith.addf %39, %40 : vector<128x128xf32>
    %42 = arith.truncf %41 : vector<128x128xf32> to vector<128x128xbf16>
    %c0_67 = arith.constant 0 : index
    %c0_68 = arith.constant 0 : index
    %c0_69 = arith.constant 0 : index
    %c0_70 = arith.constant 0 : index
    %43 = vector.load %arg5[%c0_67, %c0_68, %c0_69, %c0_70] : memref<1x1x128x128xbf16, #tpu.memory_space<vmem>>, vector<1x1x128x128xbf16>
    %44 = vector.shape_cast %43 : vector<1x1x128x128xbf16> to vector<128x128xbf16>
    %45 = vector.shape_cast %42 : vector<128x128xbf16> to vector<1x1x128x128xbf16>
    tpu.vector_store %arg5[%c0_67, %c0_68, %c0_69, %c0_70], %45 {strides = array<i32>} : memref<1x1x128x128xbf16, #tpu.memory_space<vmem>>, vector<1x1x128x128xbf16>,
    return
  }
  func.func @transform_0(%arg0: i32, %arg1: i32) -> (i32, i32, i32, i32, i32, i32) {
    %c0_i32 = arith.constant 0 : i32
    %c0_i32_0 = arith.constant 0 : i32
    %c0_i32_1 = arith.constant 0 : i32
    %c0_i32_2 = arith.constant 0 : i32
    %c0_i32_3 = arith.constant 0 : i32
    return %arg0, %arg1, %c0_i32, %c0_i32_0, %c0_i32_1, %c0_i32_2 : i32, i32, i32, i32, i32, i32
  }
  func.func @transform_1(%arg0: i32, %arg1: i32) -> (i32, i32) {
    %c0_i32 = arith.constant 0 : i32
    %c0_i32_0 = arith.constant 0 : i32
    %c0_i32_1 = arith.constant 0 : i32
    return %c0_i32, %c0_i32_0 : i32, i32
  }
  func.func @transform_2(%arg0: i32, %arg1: i32) -> (i32, i32) {
    %c0_i32 = arith.constant 0 : i32
    %c0_i32_0 = arith.constant 0 : i32
    %c0_i32_1 = arith.constant 0 : i32
    return %c0_i32, %c0_i32_0 : i32, i32
  }
  func.func @transform_3(%arg0: i32, %arg1: i32) -> (i32, i32, i32, i32) {
    %c0_i32 = arith.constant 0 : i32
    %c0_i32_0 = arith.constant 0 : i32
    %c0_i32_1 = arith.constant 0 : i32
    return %arg0, %arg1, %c0_i32, %c0_i32_0 : i32, i32, i32, i32
  }
}

</mosaic_0001>

<llo_original>
// kernel: conv_layer_forward.1
$region0: #{conv_layer_forward.1}
  #allocation0 [shape = 'u32[]', space=smem, size = 0x4, offset = 0x4, fixed_abs, tag = 'smem constant byte address 0x4 - core index']
  #allocation1 [shape = 'u32[144,128]{1,0:T(1,128)}', space=vmem, size = 0x12000, scoped, tag = 'internal scratch']
  #allocation2 [shape = 'bf16[128,36]{1,0:T(8,128)(2,1)}', space=vmem, size = 0x8000, scoped, tag = 'scratch operand']
  %s0 = inlined_call_operand.vmem [shape: bf16[2,2,1,10,18,4], index: 0, kind: input, shape index: {}]
  %s1 = inlined_call_operand.vmem [shape: bf16[36,128], index: 1, kind: input, shape index: {}]
  %s2 = inlined_call_operand.vmem [shape: f32[1,128], index: 2, kind: input, shape index: {}]
  %s3 = inlined_call_operand.vmem [shape: bf16[2,2,128,128], index: 3, kind: output, shape index: {}]
  %s4 = sld [smem:[#allocation0]]
  $region45: #{conv_layer_forward.1} parent=0
    _
  %s6 = ssub.s32 1, %s4
  %s7 = scalar_select 0, %s6, %s4
  loop: start=0, step=1, limit=6
  $region2: #{conv_layer_forward.1} parent=0 // loop_pre_header
    _
  $region3: #{conv_layer_forward.1} parent=0 // loop_header
    %s9 = sphi 0, %s13
    %p10 = scmp.ge.s32.totalorder %s9, 6
    %s16 = sphi 0, %s28
    %s17 = sphi 0, %s24
    %s18 = sphi 0, %s16
    %s19 = sphi 0, %s17
    %s20 = sphi 0, %s18
    %s21 = sphi 0, %s19
    %s33 = sphi 0, %s35
    %s36 = sphi 0, %s33
    %s37 = sphi 0, %s36
    %s53 = sphi 0, %s37
    %s57 = sphi 0, %s57
    %s59 = sphi 0, %s57
    %s60 = sphi 0, %s59
    %s74 = sphi 0, %s60
    %s78 = sphi 0, %s78
    %s80 = sphi 0, %s78
    %s81 = sphi 0, %s80
    %s95 = sphi 0, %s81
    %s103 = sphi 0, %s105
    %s106 = sphi 0, %s103
    %s107 = sphi 0, %s106
    %s123 = sphi 0, %s107
  $region4: #{conv_layer_forward.1} parent=0 // loop_header_branch
    %12 = sbr.rel (%p10) target = $region8
  $region5: #{conv_layer_forward.1} parent=0 // loop_body
    %s14 = ssub.s32 %s9, 1
    %s15 = ssub.s32 %s9, 2
    %s22 = sadd.s32 1, %s17
    %p23 = scmp.ge.s32.totalorder %s22, 2
    %s24 = scalar_select %p23, 0, %s22
    %s25 = sadd.s32 1, %s16
    %s26 = scalar_select %p23, %s25, %s16
    %p27 = scmp.ge.s32.totalorder %s26, 2
    %s28 = scalar_select %p27, 0, %s26
    %s29 = ssub.s32 %s16, %s28
    %s30 = ssub.s32 %s17, %s24
    %s31 = sor.u32 %s29, %s30
    %p32 = scmp.eq.s32.totalorder %s31, 0
    %s34 = sadd.s32 %s33, 1
    %s35 = scalar_select %p32, %s33, %s34
    %p38 = pneg %p32
    %p39 = scmp.eq.s32.totalorder %s9, 3
    %p40 = por %p38, %p39
    %p41 = scmp.ne.s32.totalorder %s33, %s36
    %p42 = scmp.eq.s32.totalorder %s9, 0
    %p43 = por %p41, %p42
    %p44 = scmp.ne.s32.totalorder %s33, %s36
    %p45 = scmp.eq.s32.totalorder %s14, 3
    %p46 = por %p44, %p45
    %p47 = scmp.ne.s32.totalorder %s36, %s37
    %p48 = scmp.eq.s32.totalorder %s14, 0
    %p49 = por %p47, %p48
    %p50 = scmp.ne.s32.totalorder %s36, %s37
    %p51 = scmp.eq.s32.totalorder %s15, 3
    %p52 = por %p50, %p51
    %p54 = scmp.ne.s32.totalorder %s37, %s53
    %p55 = scmp.eq.s32.totalorder %s15, 0
    %p56 = por %p54, %p55
    %s58 = sadd.s32 %s57, 1
    %p61 = scmp.eq.s32.totalorder %s9, 3
    %p62 = scmp.ne.s32.totalorder %s57, %s59
    %p63 = scmp.eq.s32.totalorder %s9, 0
    %p64 = por %p62, %p63
    %p65 = scmp.ne.s32.totalorder %s57, %s59
    %p66 = scmp.eq.s32.totalorder %s14, 3
    %p67 = por %p65, %p66
    %p68 = scmp.ne.s32.totalorder %s59, %s60
    %p69 = scmp.eq.s32.totalorder %s14, 0
    %p70 = por %p68, %p69
    %p71 = scmp.ne.s32.totalorder %s59, %s60
    %p72 = scmp.eq.s32.totalorder %s15, 3
    %p73 = por %p71, %p72
    %p75 = scmp.ne.s32.totalorder %s60, %s74
    %p76 = scmp.eq.s32.totalorder %s15, 0
    %p77 = por %p75, %p76
    %s79 = sadd.s32 %s78, 1
    %p82 = scmp.eq.s32.totalorder %s9, 3
    %p83 = scmp.ne.s32.totalorder %s78, %s80
    %p84 = scmp.eq.s32.totalorder %s9, 0
    %p85 = por %p83, %p84
    %p86 = scmp.ne.s32.totalorder %s78, %s80
    %p87 = scmp.eq.s32.totalorder %s14, 3
    %p88 = por %p86, %p87
    %p89 = scmp.ne.s32.totalorder %s80, %s81
    %p90 = scmp.eq.s32.totalorder %s14, 0
    %p91 = por %p89, %p90
    %p92 = scmp.ne.s32.totalorder %s80, %s81
    %p93 = scmp.eq.s32.totalorder %s15, 3
    %p94 = por %p92, %p93
    %p96 = scmp.ne.s32.totalorder %s81, %s95
    %p97 = scmp.eq.s32.totalorder %s15, 0
    %p98 = por %p96, %p97
    %s99 = ssub.s32 %s16, %s28
    %s100 = ssub.s32 %s17, %s24
    %s101 = sor.u32 %s99, %s100
    %p102 = scmp.eq.s32.totalorder %s101, 0
    %s104 = sadd.s32 %s103, 1
    %s105 = scalar_select %p102, %s103, %s104
    %p108 = pneg %p102
    %p109 = scmp.eq.s32.totalorder %s9, 3
    %p110 = por %p108, %p109
    %p111 = scmp.ne.s32.totalorder %s103, %s106
    %p112 = scmp.eq.s32.totalorder %s9, 0
    %p113 = por %p111, %p112
    %p114 = scmp.ne.s32.totalorder %s103, %s106
    %p115 = scmp.eq.s32.totalorder %s14, 3
    %p116 = por %p114, %p115
    %p117 = scmp.ne.s32.totalorder %s106, %s107
    %p118 = scmp.eq.s32.totalorder %s14, 0
    %p119 = por %p117, %p118
    %p120 = scmp.ne.s32.totalorder %s106, %s107
    %p121 = scmp.eq.s32.totalorder %s15, 3
    %p122 = por %p120, %p121
    %p124 = scmp.ne.s32.totalorder %s107, %s123
    %p125 = scmp.eq.s32.totalorder %s15, 0
    %p126 = por %p124, %p125
    %p127 = scmp.le.s32.totalorder 1, %s9
    %p128 = scmp.lt.s32.totalorder %s9, 5
    %p129 = pnand %p127, %p128
    %p130 = pneg %p129
    // Predicated region
    $region9: #{conv_layer_forward.1} parent=5 // pred_check
      _
    $region10: #{conv_layer_forward.1} parent=5 // pred_check_branch
      %132 = sbr.rel (%p129) target = $region12
    $region11: #{conv_layer_forward.1} parent=5 // pred_region
      %s133 = ssub.s32 %s9, 1
      // Predicated region
      $region13: #{conv_layer_forward.1} parent=11 // pred_check
        %p134 = pneg %p70
      $region14: #{conv_layer_forward.1} parent=11 // pred_check_branch
        %136 = sbr.rel (%p134) target = $region16
      $region15: #{conv_layer_forward.1} parent=11 // pred_region
        _
      $region16: #{conv_layer_forward.1} parent=11 // pred_fallthru
        _
      // Predicated region
      $region17: #{conv_layer_forward.1} parent=11 // pred_check
        %p137 = pneg %p91
      $region18: #{conv_layer_forward.1} parent=11 // pred_check_branch
        %139 = sbr.rel (%p137) target = $region20
      $region19: #{conv_layer_forward.1} parent=11 // pred_region
        _
      $region20: #{conv_layer_forward.1} parent=11 // pred_fallthru
        _
    $region12: #{conv_layer_forward.1} parent=5 // pred_fallthru
      _
    %p140 = scmp.lt.s32.totalorder %s9, 4
    // Predicated region
    $region21: #{conv_layer_forward.1} parent=5 // pred_check
      %p141 = pneg %p140
    $region22: #{conv_layer_forward.1} parent=5 // pred_check_branch
      %143 = sbr.rel (%p141) target = $region24
    $region23: #{conv_layer_forward.1} parent=5 // pred_region
      // Predicated region
      $region25: #{conv_layer_forward.1} parent=23 // pred_check
        %p144 = pneg %p43
      $region26: #{conv_layer_forward.1} parent=23 // pred_check_branch
        %146 = sbr.rel (%p144) target = $region28
      $region27: #{conv_layer_forward.1} parent=23 // pred_region
        %p147 = scmp.lt.s32.totalorder %s16, 1
        %s148 = scalar_select %p147, %s16, 1
        %p149 = scmp.lt.s32.totalorder %s17, 1
        %s150 = scalar_select %p149, %s17, 1
        %s151 = smul.addr %s150, 30
        %s152 = smul.addr %s148, 60
        %s153 = sadd.s32 %s151, %s152
        %s154 = smul.addr %s153, 4
        %s155 = scalar_lea.vmem %s0, %s154
      $region28: #{conv_layer_forward.1} parent=23 // pred_fallthru
        _
    $region24: #{conv_layer_forward.1} parent=5 // pred_fallthru
      _
    %p156 = scmp.le.s32.totalorder 1, %s9
    %p157 = scmp.lt.s32.totalorder %s9, 5
    %p158 = pnand %p156, %p157
    %p159 = pneg %p158
    // Predicated region
    $region29: #{conv_layer_forward.1} parent=5 // pred_check
      _
    $region30: #{conv_layer_forward.1} parent=5 // pred_check_branch
      %161 = sbr.rel (%p158) target = $region32
    $region31: #{conv_layer_forward.1} parent=5 // pred_region
      %s162 = ssub.s32 %s9, 1
      %p163 = scmp.lt.s32.totalorder %s18, 1
      %s164 = scalar_select %p163, %s18, 1
      %p165 = scmp.lt.s32.totalorder %s19, 1
      %s166 = scalar_select %p165, %s19, 1
      %s167 = smul.addr %s166, 30
      %s168 = smul.addr %s164, 60
      %s169 = sadd.s32 %s167, %s168
      %s170 = smul.addr %s169, 4
      %s171 = scalar_lea.vmem %s0, %s170
      %p172 = pneg %p49
      %p173 = pneg %p46
      %p174 = pneg %p70
      %p175 = pneg %p67
      %p176 = pneg %p91
      %p177 = pneg %p88
      %p178 = pneg %p119
      %p179 = pneg %p116
      %p180 = scmp.lt.s32.totalorder %s18, 1
      %s181 = scalar_select %p180, %s18, 1
      %p182 = scmp.lt.s32.totalorder %s19, 1
      %s183 = scalar_select %p182, %s19, 1
      %s184 = smul.addr %s183, 16
      %s185 = smul.addr %s181, 32
      %s186 = sadd.s32 %s184, %s185
      %s187 = smul.addr %s186, 4
      %s188 = scalar_lea.vmem %s3, %s187
      %p189 = scmp.lt.s32.totalorder %s18, 1
      %s190 = scalar_select %p189, %s18, 1
      %p191 = scmp.lt.s32.totalorder %s19, 1
      %s192 = scalar_select %p191, %s19, 1
      %s193 = smul.addr %s192, 30
      %s194 = smul.addr %s190, 60
      %s195 = sadd.s32 %s193, %s194
      %s196 = smul.addr %s195, 4
      %s197 = scalar_lea.vmem %s0, %s196
      %p198 = scmp.lt.s32.totalorder %s18, 1
      %s199 = scalar_select %p198, %s18, 1
      %p200 = scmp.lt.s32.totalorder %s19, 1
      %s201 = scalar_select %p200, %s19, 1
      %s202 = smul.addr %s201, 16
      %s203 = smul.addr %s199, 32
      %s204 = sadd.s32 %s202, %s203
      %s205 = smul.addr %s204, 4
      %s206 = scalar_lea.vmem %s3, %s205
      %v208 = vld [vmem:[%s197] sm:$0xf]
      %v209 = vld [vmem:[%s197 + $0x4] sm:$0xf]
      %v210 = vld [vmem:[%s197 + $0xc] sm:$0xf]
      %v211 = vld [vmem:[%s197 + $0x10] sm:$0xf]
      %v212 = vld [vmem:[%s197 + $0x18] sm:$0xf]
      %v213 = vld [vmem:[%s197 + $0x1c] sm:$0xf]
      %v214 = vld [vmem:[%s197 + $0x24] sm:$0xf]
      %v215 = vld [vmem:[%s197 + $0x28] sm:$0xf]
      %v216 = vld [vmem:[%s197 + $0x30] sm:$0xf]
      %v217 = vld [vmem:[%s197 + $0x34] sm:$0xf]
      %v218 = vld [vmem:[%s197 + $0x3c] sm:$0xf]
      %v219 = vld [vmem:[%s197 + $0x40] sm:$0xf]
      %v220 = vld [vmem:[%s197 + $0x48] sm:$0xf]
      %v221 = vld [vmem:[%s197 + $0x4c] sm:$0xf]
      %v222 = vld [vmem:[%s197 + $0x54] sm:$0xf]
      %v223 = vld [vmem:[%s197 + $0x58] sm:$0xf]
      %vm224 = vcmask 27648
      %225 = vst.msk [vmem:[#allocation2] sm:$0xf] %vm224, %v208
      %226 = vst.msk [vmem:[#allocation2 + $0x4] sm:$0xf] %vm224, %v209
      %227 = vst.msk [vmem:[#allocation2 + $0x8] sm:$0xf] %vm224, %v210
      %228 = vst.msk [vmem:[#allocation2 + $0xc] sm:$0xf] %vm224, %v211
      %229 = vst.msk [vmem:[#allocation2 + $0x10] sm:$0xf] %vm224, %v212
      %230 = vst.msk [vmem:[#allocation2 + $0x14] sm:$0xf] %vm224, %v213
      %231 = vst.msk [vmem:[#allocation2 + $0x18] sm:$0xf] %vm224, %v214
      %232 = vst.msk [vmem:[#allocation2 + $0x1c] sm:$0xf] %vm224, %v215
      %233 = vst.msk [vmem:[#allocation2 + $0x20] sm:$0xf] %vm224, %v216
      %234 = vst.msk [vmem:[#allocation2 + $0x24] sm:$0xf] %vm224, %v217
      %235 = vst.msk [vmem:[#allocation2 + $0x28] sm:$0xf] %vm224, %v218
      %236 = vst.msk [vmem:[#allocation2 + $0x2c] sm:$0xf] %vm224, %v219
      %237 = vst.msk [vmem:[#allocation2 + $0x30] sm:$0xf] %vm224, %v220
      %238 = vst.msk [vmem:[#allocation2 + $0x34] sm:$0xf] %vm224, %v221
      %239 = vst.msk [vmem:[#allocation2 + $0x38] sm:$0xf] %vm224, %v222
      %240 = vst.msk [vmem:[#allocation2 + $0x3c] sm:$0xf] %vm224, %v223
      %v241 = vld [vmem:[%s197] sm:$0xf]
      %v242 = vld [vmem:[%s197 + $0x4] sm:$0xf]
      %v243 = vld [vmem:[%s197 + $0x8] sm:$0x1]
      %v244 = vld [vmem:[%s197 + $0xc] sm:$0xf]
      %v245 = vld [vmem:[%s197 + $0x10] sm:$0xf]
      %v246 = vld [vmem:[%s197 + $0x14] sm:$0x1]
      %v247 = vld [vmem:[%s197 + $0x18] sm:$0xf]
      %v248 = vld [vmem:[%s197 + $0x1c] sm:$0xf]
      %v249 = vld [vmem:[%s197 + $0x20] sm:$0x1]
      %v250 = vld [vmem:[%s197 + $0x24] sm:$0xf]
      %v251 = vld [vmem:[%s197 + $0x28] sm:$0xf]
      %v252 = vld [vmem:[%s197 + $0x2c] sm:$0x1]
      %v253 = vld [vmem:[%s197 + $0x30] sm:$0xf]
      %v254 = vld [vmem:[%s197 + $0x34] sm:$0xf]
      %v255 = vld [vmem:[%s197 + $0x38] sm:$0x1]
      %v256 = vld [vmem:[%s197 + $0x3c] sm:$0xf]
      %v257 = vld [vmem:[%s197 + $0x40] sm:$0xf]
      %v258 = vld [vmem:[%s197 + $0x44] sm:$0x1]
      %v259 = vld [vmem:[%s197 + $0x48] sm:$0xf]
      %v260 = vld [vmem:[%s197 + $0x4c] sm:$0xf]
      %v261 = vld [vmem:[%s197 + $0x50] sm:$0x1]
      %v262 = vld [vmem:[%s197 + $0x54] sm:$0xf]
      %v263 = vld [vmem:[%s197 + $0x58] sm:$0xf]
      %v264 = vld [vmem:[%s197 + $0x5c] sm:$0x1]
      %vm265 = vsmask.f32 3328
      %vm266 = vsmask.f32 7440
      %vm267 = vmor %vm265, %vm266
      %v269 = vshrl.u32 %v241, 16
      %v271 = vrot.slane %v269, 4
      %v272 = vshll.u32 %v241, 16
      %v274 = vrot.slane %v272, 5
      %v275 = vor.u32 %v271, %v274
      %v276 = vrot.slane %v275, 4
      %v278 = vshll.u32 %v242, 16
      %v280 = vrot.slane %v278, 5
      %v281 = vsel %vm267, %v276, %v280
      %v282 = vshrl.u32 %v242, 16
      %v284 = vrot.slane %v282, 4
      %v285 = vor.u32 %v284, %v280
      %v286 = vrot.slane %v285, 4
      %v288 = vshll.u32 %v243, 16
      %v290 = vrot.slane %v288, 5
      %v291 = vsel %vm267, %v286, %v290
      %v293 = vshrl.u32 %v244, 16
      %v295 = vrot.slane %v293, 4
      %v296 = vshll.u32 %v244, 16
      %v298 = vrot.slane %v296, 5
      %v299 = vor.u32 %v295, %v298
      %v300 = vrot.slane %v299, 4
      %v302 = vshll.u32 %v245, 16
      %v304 = vrot.slane %v302, 5
      %v305 = vsel %vm267, %v300, %v304
      %v306 = vshrl.u32 %v245, 16
      %v308 = vrot.slane %v306, 4
      %v309 = vor.u32 %v308, %v304
      %v310 = vrot.slane %v309, 4
      %v312 = vshll.u32 %v246, 16
      %v314 = vrot.slane %v312, 5
      %v315 = vsel %vm267, %v310, %v314
      %v317 = vshrl.u32 %v247, 16
      %v319 = vrot.slane %v317, 4
      %v320 = vshll.u32 %v247, 16
      %v322 = vrot.slane %v320, 5
      %v323 = vor.u32 %v319, %v322
      %v324 = vrot.slane %v323, 4
      %v326 = vshll.u32 %v248, 16
      %v328 = vrot.slane %v326, 5
      %v329 = vsel %vm267, %v324, %v328
      %v330 = vshrl.u32 %v248, 16
      %v332 = vrot.slane %v330, 4
      %v333 = vor.u32 %v332, %v328
      %v334 = vrot.slane %v333, 4
      %v336 = vshll.u32 %v249, 16
      %v338 = vrot.slane %v336, 5
      %v339 = vsel %vm267, %v334, %v338
      %v341 = vshrl.u32 %v250, 16
      %v343 = vrot.slane %v341, 4
      %v344 = vshll.u32 %v250, 16
      %v346 = vrot.slane %v344, 5
      %v347 = vor.u32 %v343, %v346
      %v348 = vrot.slane %v347, 4
      %v350 = vshll.u32 %v251, 16
      %v352 = vrot.slane %v350, 5
      %v353 = vsel %vm267, %v348, %v352
      %v354 = vshrl.u32 %v251, 16
      %v356 = vrot.slane %v354, 4
      %v357 = vor.u32 %v356, %v352
      %v358 = vrot.slane %v357, 4
      %v360 = vshll.u32 %v252, 16
      %v362 = vrot.slane %v360, 5
      %v363 = vsel %vm267, %v358, %v362
      %v365 = vshrl.u32 %v253, 16
      %v367 = vrot.slane %v365, 4
      %v368 = vshll.u32 %v253, 16
      %v370 = vrot.slane %v368, 5
      %v371 = vor.u32 %v367, %v370
      %v372 = vrot.slane %v371, 4
      %v374 = vshll.u32 %v254, 16
      %v376 = vrot.slane %v374, 5
      %v377 = vsel %vm267, %v372, %v376
      %v378 = vshrl.u32 %v254, 16
      %v380 = vrot.slane %v378, 4
      %v381 = vor.u32 %v380, %v376
      %v382 = vrot.slane %v381, 4
      %v384 = vshll.u32 %v255, 16
      %v386 = vrot.slane %v384, 5
      %v387 = vsel %vm267, %v382, %v386
      %v389 = vshrl.u32 %v256, 16
      %v391 = vrot.slane %v389, 4
      %v392 = vshll.u32 %v256, 16
      %v394 = vrot.slane %v392, 5
      %v395 = vor.u32 %v391, %v394
      %v396 = vrot.slane %v395, 4
      %v398 = vshll.u32 %v257, 16
      %v400 = vrot.slane %v398, 5
      %v401 = vsel %vm267, %v396, %v400
      %v402 = vshrl.u32 %v257, 16
      %v404 = vrot.slane %v402, 4
      %v405 = vor.u32 %v404, %v400
      %v406 = vrot.slane %v405, 4
      %v408 = vshll.u32 %v258, 16
      %v410 = vrot.slane %v408, 5
      %v411 = vsel %vm267, %v406, %v410
      %v413 = vshrl.u32 %v259, 16
      %v415 = vrot.slane %v413, 4
      %v416 = vshll.u32 %v259, 16
      %v418 = vrot.slane %v416, 5
      %v419 = vor.u32 %v415, %v418
      %v420 = vrot.slane %v419, 4
      %v422 = vshll.u32 %v260, 16
      %v424 = vrot.slane %v422, 5
      %v425 = vsel %vm267, %v420, %v424
      %v426 = vshrl.u32 %v260, 16
      %v428 = vrot.slane %v426, 4
      %v429 = vor.u32 %v428, %v424
      %v430 = vrot.slane %v429, 4
      %v432 = vshll.u32 %v261, 16
      %v434 = vrot.slane %v432, 5
      %v435 = vsel %vm267, %v430, %v434
      %v437 = vshrl.u32 %v262, 16
      %v439 = vrot.slane %v437, 4
      %v440 = vshll.u32 %v262, 16
      %v442 = vrot.slane %v440, 5
      %v443 = vor.u32 %v439, %v442
      %v444 = vrot.slane %v443, 4
      %v446 = vshll.u32 %v263, 16
      %v448 = vrot.slane %v446, 5
      %v449 = vsel %vm267, %v444, %v448
      %v450 = vshrl.u32 %v263, 16
      %v452 = vrot.slane %v450, 4
      %v453 = vor.u32 %v452, %v448
      %v454 = vrot.slane %v453, 4
      %v456 = vshll.u32 %v264, 16
      %v458 = vrot.slane %v456, 5
      %v459 = vsel %vm267, %v454, %v458
      %460 = vrot.lane.b32.xlu0 %v281, 4
      %v461 = vpop.permute.xlu0 %460
      %462 = vrot.lane.b32.xlu0 %v291, 4
      %v463 = vpop.permute.xlu0 %462
      %464 = vrot.lane.b32.xlu0 %v305, 4
      %v465 = vpop.permute.xlu0 %464
      %466 = vrot.lane.b32.xlu0 %v315, 4
      %v467 = vpop.permute.xlu0 %466
      %468 = vrot.lane.b32.xlu0 %v329, 4
      %v469 = vpop.permute.xlu0 %468
      %470 = vrot.lane.b32.xlu0 %v339, 4
      %v471 = vpop.permute.xlu0 %470
      %472 = vrot.lane.b32.xlu0 %v353, 4
      %v473 = vpop.permute.xlu0 %472
      %474 = vrot.lane.b32.xlu0 %v363, 4
      %v475 = vpop.permute.xlu0 %474
      %476 = vrot.lane.b32.xlu0 %v377, 4
      %v477 = vpop.permute.xlu0 %476
      %478 = vrot.lane.b32.xlu0 %v387, 4
      %v479 = vpop.permute.xlu0 %478
      %480 = vrot.lane.b32.xlu0 %v401, 4
      %v481 = vpop.permute.xlu0 %480
      %482 = vrot.lane.b32.xlu0 %v411, 4
      %v483 = vpop.permute.xlu0 %482
      %484 = vrot.lane.b32.xlu0 %v425, 4
      %v485 = vpop.permute.xlu0 %484
      %486 = vrot.lane.b32.xlu0 %v435, 4
      %v487 = vpop.permute.xlu0 %486
      %488 = vrot.lane.b32.xlu0 %v449, 4
      %v489 = vpop.permute.xlu0 %488
      %490 = vrot.lane.b32.xlu0 %v459, 4
      %v491 = vpop.permute.xlu0 %490
      %vm508 = vcmask 60448
      %509 = vst.msk [vmem:[#allocation2] sm:$0xf] %vm508, %v461
      %510 = vst.msk [vmem:[#allocation2 + $0x4] sm:$0xf] %vm508, %v463
      %511 = vst.msk [vmem:[#allocation2 + $0x8] sm:$0xf] %vm508, %v465
      %512 = vst.msk [vmem:[#allocation2 + $0xc] sm:$0xf] %vm508, %v467
      %513 = vst.msk [vmem:[#allocation2 + $0x10] sm:$0xf] %vm508, %v469
      %514 = vst.msk [vmem:[#allocation2 + $0x14] sm:$0xf] %vm508, %v471
      %515 = vst.msk [vmem:[#allocation2 + $0x18] sm:$0xf] %vm508, %v473
      %516 = vst.msk [vmem:[#allocation2 + $0x1c] sm:$0xf] %vm508, %v475
      %517 = vst.msk [vmem:[#allocation2 + $0x20] sm:$0xf] %vm508, %v477
      %518 = vst.msk [vmem:[#allocation2 + $0x24] sm:$0xf] %vm508, %v479
      %519 = vst.msk [vmem:[#allocation2 + $0x28] sm:$0xf] %vm508, %v481
      %520 = vst.msk [vmem:[#allocation2 + $0x2c] sm:$0xf] %vm508, %v483
      %521 = vst.msk [vmem:[#allocation2 + $0x30] sm:$0xf] %vm508, %v485
      %522 = vst.msk [vmem:[#allocation2 + $0x34] sm:$0xf] %vm508, %v487
      %523 = vst.msk [vmem:[#allocation2 + $0x38] sm:$0xf] %vm508, %v489
      %524 = vst.msk [vmem:[#allocation2 + $0x3c] sm:$0xf] %vm508, %v491
      %v525 = vld [vmem:[%s197] sm:$0xe]
      %v526 = vld [vmem:[%s197 + $0x4] sm:$0xf]
      %v527 = vld [vmem:[%s197 + $0x8] sm:$0x1]
      %v528 = vld [vmem:[%s197 + $0xc] sm:$0xe]
      %v529 = vld [vmem:[%s197 + $0x10] sm:$0xf]
      %v530 = vld [vmem:[%s197 + $0x14] sm:$0x1]
      %v531 = vld [vmem:[%s197 + $0x18] sm:$0xe]
      %v532 = vld [vmem:[%s197 + $0x1c] sm:$0xf]
      %v533 = vld [vmem:[%s197 + $0x20] sm:$0x1]
      %v534 = vld [vmem:[%s197 + $0x24] sm:$0xe]
      %v535 = vld [vmem:[%s197 + $0x28] sm:$0xf]
      %v536 = vld [vmem:[%s197 + $0x2c] sm:$0x1]
      %v537 = vld [vmem:[%s197 + $0x30] sm:$0xe]
      %v538 = vld [vmem:[%s197 + $0x34] sm:$0xf]
      %v539 = vld [vmem:[%s197 + $0x38] sm:$0x1]
      %v540 = vld [vmem:[%s197 + $0x3c] sm:$0xe]
      %v541 = vld [vmem:[%s197 + $0x40] sm:$0xf]
      %v542 = vld [vmem:[%s197 + $0x44] sm:$0x1]
      %v543 = vld [vmem:[%s197 + $0x48] sm:$0xe]
      %v544 = vld [vmem:[%s197 + $0x4c] sm:$0xf]
      %v545 = vld [vmem:[%s197 + $0x50] sm:$0x1]
      %v546 = vld [vmem:[%s197 + $0x54] sm:$0xe]
      %v547 = vld [vmem:[%s197 + $0x58] sm:$0xf]
      %v548 = vld [vmem:[%s197 + $0x5c] sm:$0x1]
      %vm573 = vcmask 1042432
      %vm574 = vcmask 1046532
      %vm575 = vmor %vm573, %vm574
      %v576 = vrot.slane %v525, 5
      %v577 = vrot.slane %v576, 4
      %v578 = vrot.slane %v526, 5
      %v579 = vsel %vm575, %v577, %v578
      %v580 = vrot.slane %v578, 4
      %v581 = vrot.slane %v527, 5
      %v582 = vsel %vm575, %v580, %v581
      %v583 = vrot.slane %v528, 5
      %v584 = vrot.slane %v583, 4
      %v585 = vrot.slane %v529, 5
      %v586 = vsel %vm575, %v584, %v585
      %v587 = vrot.slane %v585, 4
      %v588 = vrot.slane %v530, 5
      %v589 = vsel %vm575, %v587, %v588
      %v590 = vrot.slane %v531, 5
      %v591 = vrot.slane %v590, 4
      %v592 = vrot.slane %v532, 5
      %v593 = vsel %vm575, %v591, %v592
      %v594 = vrot.slane %v592, 4
      %v595 = vrot.slane %v533, 5
      %v596 = vsel %vm575, %v594, %v595
      %v597 = vrot.slane %v534, 5
      %v598 = vrot.slane %v597, 4
      %v599 = vrot.slane %v535, 5
      %v600 = vsel %vm575, %v598, %v599
      %v601 = vrot.slane %v599, 4
      %v602 = vrot.slane %v536, 5
      %v603 = vsel %vm575, %v601, %v602
      %v604 = vrot.slane %v537, 5
      %v605 = vrot.slane %v604, 4
      %v606 = vrot.slane %v538, 5
      %v607 = vsel %vm575, %v605, %v606
      %v608 = vrot.slane %v606, 4
      %v609 = vrot.slane %v539, 5
      %v610 = vsel %vm575, %v608, %v609
      %v611 = vrot.slane %v540, 5
      %v612 = vrot.slane %v611, 4
      %v613 = vrot.slane %v541, 5
      %v614 = vsel %vm575, %v612, %v613
      %v615 = vrot.slane %v613, 4
      %v616 = vrot.slane %v542, 5
      %v617 = vsel %vm575, %v615, %v616
      %v618 = vrot.slane %v543, 5
      %v619 = vrot.slane %v618, 4
      %v620 = vrot.slane %v544, 5
      %v621 = vsel %vm575, %v619, %v620
      %v622 = vrot.slane %v620, 4
      %v623 = vrot.slane %v545, 5
      %v624 = vsel %vm575, %v622, %v623
      %v625 = vrot.slane %v546, 5
      %v626 = vrot.slane %v625, 4
      %v627 = vrot.slane %v547, 5
      %v628 = vsel %vm575, %v626, %v627
      %v629 = vrot.slane %v627, 4
      %v630 = vrot.slane %v548, 5
      %v631 = vsel %vm575, %v629, %v630
      %632 = vrot.lane.b32.xlu0 %v579, 8
      %v633 = vpop.permute.xlu0 %632
      %634 = vrot.lane.b32.xlu0 %v582, 8
      %v635 = vpop.permute.xlu0 %634
      %636 = vrot.lane.b32.xlu0 %v586, 8
      %v637 = vpop.permute.xlu0 %636
      %638 = vrot.lane.b32.xlu0 %v589, 8
      %v639 = vpop.permute.xlu0 %638
      %640 = vrot.lane.b32.xlu0 %v593, 8
      %v641 = vpop.permute.xlu0 %640
      %642 = vrot.lane.b32.xlu0 %v596, 8
      %v643 = vpop.permute.xlu0 %642
      %644 = vrot.lane.b32.xlu0 %v600, 8
      %v645 = vpop.permute.xlu0 %644
      %646 = vrot.lane.b32.xlu0 %v603, 8
      %v647 = vpop.permute.xlu0 %646
      %648 = vrot.lane.b32.xlu0 %v607, 8
      %v649 = vpop.permute.xlu0 %648
      %650 = vrot.lane.b32.xlu0 %v610, 8
      %v651 = vpop.permute.xlu0 %650
      %652 = vrot.lane.b32.xlu0 %v614, 8
      %v653 = vpop.permute.xlu0 %652
      %654 = vrot.lane.b32.xlu0 %v617, 8
      %v655 = vpop.permute.xlu0 %654
      %656 = vrot.lane.b32.xlu0 %v621, 8
      %v657 = vpop.permute.xlu0 %656
      %658 = vrot.lane.b32.xlu0 %v624, 8
      %v659 = vpop.permute.xlu0 %658
      %660 = vrot.lane.b32.xlu0 %v628, 8
      %v661 = vpop.permute.xlu0 %660
      %662 = vrot.lane.b32.xlu0 %v631, 8
      %v663 = vpop.permute.xlu0 %662
      %vm680 = vcmask 93248
      %681 = vst.msk [vmem:[#allocation2] sm:$0xf] %vm680, %v633
      %682 = vst.msk [vmem:[#allocation2 + $0x4] sm:$0xf] %vm680, %v635
      %683 = vst.msk [vmem:[#allocation2 + $0x8] sm:$0xf] %vm680, %v637
      %684 = vst.msk [vmem:[#allocation2 + $0xc] sm:$0xf] %vm680, %v639
      %685 = vst.msk [vmem:[#allocation2 + $0x10] sm:$0xf] %vm680, %v641
      %686 = vst.msk [vmem:[#allocation2 + $0x14] sm:$0xf] %vm680, %v643
      %687 = vst.msk [vmem:[#allocation2 + $0x18] sm:$0xf] %vm680, %v645
      %688 = vst.msk [vmem:[#allocation2 + $0x1c] sm:$0xf] %vm680, %v647
      %689 = vst.msk [vmem:[#allocation2 + $0x20] sm:$0xf] %vm680, %v649
      %690 = vst.msk [vmem:[#allocation2 + $0x24] sm:$0xf] %vm680, %v651
      %691 = vst.msk [vmem:[#allocation2 + $0x28] sm:$0xf] %vm680, %v653
      %692 = vst.msk [vmem:[#allocation2 + $0x2c] sm:$0xf] %vm680, %v655
      %693 = vst.msk [vmem:[#allocation2 + $0x30] sm:$0xf] %vm680, %v657
      %694 = vst.msk [vmem:[#allocation2 + $0x34] sm:$0xf] %vm680, %v659
      %695 = vst.msk [vmem:[#allocation2 + $0x38] sm:$0xf] %vm680, %v661
      %696 = vst.msk [vmem:[#allocation2 + $0x3c] sm:$0xf] %vm680, %v663
      %s697 = scalar_lea.vmem %s197, 12
      %v698 = vld [vmem:[%s697] sm:$0xf]
      %v699 = vld [vmem:[%s697 + $0x4] sm:$0xf]
      %v700 = vld [vmem:[%s697 + $0xc] sm:$0xf]
      %v701 = vld [vmem:[%s697 + $0x10] sm:$0xf]
      %v702 = vld [vmem:[%s697 + $0x18] sm:$0xf]
      %v703 = vld [vmem:[%s697 + $0x1c] sm:$0xf]
      %v704 = vld [vmem:[%s697 + $0x24] sm:$0xf]
      %v705 = vld [vmem:[%s697 + $0x28] sm:$0xf]
      %v706 = vld [vmem:[%s697 + $0x30] sm:$0xf]
      %v707 = vld [vmem:[%s697 + $0x34] sm:$0xf]
      %v708 = vld [vmem:[%s697 + $0x3c] sm:$0xf]
      %v709 = vld [vmem:[%s697 + $0x40] sm:$0xf]
      %v710 = vld [vmem:[%s697 + $0x48] sm:$0xf]
      %v711 = vld [vmem:[%s697 + $0x4c] sm:$0xf]
      %v712 = vld [vmem:[%s697 + $0x54] sm:$0xf]
      %v713 = vld [vmem:[%s697 + $0x58] sm:$0xf]
      %730 = vrot.lane.b32.xlu0 %v698, 12
      %v731 = vpop.permute.xlu0 %730
      %732 = vrot.lane.b32.xlu0 %v699, 12
      %v733 = vpop.permute.xlu0 %732
      %734 = vrot.lane.b32.xlu0 %v700, 12
      %v735 = vpop.permute.xlu0 %734
      %736 = vrot.lane.b32.xlu0 %v701, 12
      %v737 = vpop.permute.xlu0 %736
      %738 = vrot.lane.b32.xlu0 %v702, 12
      %v739 = vpop.permute.xlu0 %738
      %740 = vrot.lane.b32.xlu0 %v703, 12
      %v741 = vpop.permute.xlu0 %740
      %742 = vrot.lane.b32.xlu0 %v704, 12
      %v743 = vpop.permute.xlu0 %742
      %744 = vrot.lane.b32.xlu0 %v705, 12
      %v745 = vpop.permute.xlu0 %744
      %746 = vrot.lane.b32.xlu0 %v706, 12
      %v747 = vpop.permute.xlu0 %746
      %748 = vrot.lane.b32.xlu0 %v707, 12
      %v749 = vpop.permute.xlu0 %748
      %750 = vrot.lane.b32.xlu0 %v708, 12
      %v751 = vpop.permute.xlu0 %750
      %752 = vrot.lane.b32.xlu0 %v709, 12
      %v753 = vpop.permute.xlu0 %752
      %754 = vrot.lane.b32.xlu0 %v710, 12
      %v755 = vpop.permute.xlu0 %754
      %756 = vrot.lane.b32.xlu0 %v711, 12
      %v757 = vpop.permute.xlu0 %756
      %758 = vrot.lane.b32.xlu0 %v712, 12
      %v759 = vpop.permute.xlu0 %758
      %760 = vrot.lane.b32.xlu0 %v713, 12
      %v761 = vpop.permute.xlu0 %760
      %vm778 = vcmask 126048
      %779 = vst.msk [vmem:[#allocation2] sm:$0xf] %vm778, %v731
      %780 = vst.msk [vmem:[#allocation2 + $0x4] sm:$0xf] %vm778, %v733
      %781 = vst.msk [vmem:[#allocation2 + $0x8] sm:$0xf] %vm778, %v735
      %782 = vst.msk [vmem:[#allocation2 + $0xc] sm:$0xf] %vm778, %v737
      %783 = vst.msk [vmem:[#allocation2 + $0x10] sm:$0xf] %vm778, %v739
      %784 = vst.msk [vmem:[#allocation2 + $0x14] sm:$0xf] %vm778, %v741
      %785 = vst.msk [vmem:[#allocation2 + $0x18] sm:$0xf] %vm778, %v743
      %786 = vst.msk [vmem:[#allocation2 + $0x1c] sm:$0xf] %vm778, %v745
      %787 = vst.msk [vmem:[#allocation2 + $0x20] sm:$0xf] %vm778, %v747
      %788 = vst.msk [vmem:[#allocation2 + $0x24] sm:$0xf] %vm778, %v749
      %789 = vst.msk [vmem:[#allocation2 + $0x28] sm:$0xf] %vm778, %v751
      %790 = vst.msk [vmem:[#allocation2 + $0x2c] sm:$0xf] %vm778, %v753
      %791 = vst.msk [vmem:[#allocation2 + $0x30] sm:$0xf] %vm778, %v755
      %792 = vst.msk [vmem:[#allocation2 + $0x34] sm:$0xf] %vm778, %v757
      %793 = vst.msk [vmem:[#allocation2 + $0x38] sm:$0xf] %vm778, %v759
      %794 = vst.msk [vmem:[#allocation2 + $0x3c] sm:$0xf] %vm778, %v761
      %v795 = vld [vmem:[%s697] sm:$0xf]
      %v796 = vld [vmem:[%s697 + $0x4] sm:$0xf]
      %v797 = vld [vmem:[%s697 + $0x8] sm:$0x1]
      %v798 = vld [vmem:[%s697 + $0xc] sm:$0xf]
      %v799 = vld [vmem:[%s697 + $0x10] sm:$0xf]
      %v800 = vld [vmem:[%s697 + $0x14] sm:$0x1]
      %v801 = vld [vmem:[%s697 + $0x18] sm:$0xf]
      %v802 = vld [vmem:[%s697 + $0x1c] sm:$0xf]
      %v803 = vld [vmem:[%s697 + $0x20] sm:$0x1]
      %v804 = vld [vmem:[%s697 + $0x24] sm:$0xf]
      %v805 = vld [vmem:[%s697 + $0x28] sm:$0xf]
      %v806 = vld [vmem:[%s697 + $0x2c] sm:$0x1]
      %v807 = vld [vmem:[%s697 + $0x30] sm:$0xf]
      %v808 = vld [vmem:[%s697 + $0x34] sm:$0xf]
      %v809 = vld [vmem:[%s697 + $0x38] sm:$0x1]
      %v810 = vld [vmem:[%s697 + $0x3c] sm:$0xf]
      %v811 = vld [vmem:[%s697 + $0x40] sm:$0xf]
      %v812 = vld [vmem:[%s697 + $0x44] sm:$0x1]
      %v813 = vld [vmem:[%s697 + $0x48] sm:$0xf]
      %v814 = vld [vmem:[%s697 + $0x4c] sm:$0xf]
      %v815 = vld [vmem:[%s697 + $0x50] sm:$0x1]
      %v816 = vld [vmem:[%s697 + $0x54] sm:$0xf]
      %v817 = vld [vmem:[%s697 + $0x58] sm:$0xf]
      %v818 = vld [vmem:[%s697 + $0x5c] sm:$0x1]
      %v820 = vshrl.u32 %v795, 16
      %v822 = vrot.slane %v820, 4
      %v823 = vshll.u32 %v795, 16
      %v825 = vrot.slane %v823, 5
      %v826 = vor.u32 %v822, %v825
      %v827 = vrot.slane %v826, 4
      %v829 = vshll.u32 %v796, 16
      %v831 = vrot.slane %v829, 5
      %v832 = vsel %vm267, %v827, %v831
      %v833 = vshrl.u32 %v796, 16
      %v835 = vrot.slane %v833, 4
      %v836 = vor.u32 %v835, %v831
      %v837 = vrot.slane %v836, 4
      %v839 = vshll.u32 %v797, 16
      %v841 = vrot.slane %v839, 5
      %v842 = vsel %vm267, %v837, %v841
      %v844 = vshrl.u32 %v798, 16
      %v846 = vrot.slane %v844, 4
      %v847 = vshll.u32 %v798, 16
      %v849 = vrot.slane %v847, 5
      %v850 = vor.u32 %v846, %v849
      %v851 = vrot.slane %v850, 4
      %v853 = vshll.u32 %v799, 16
      %v855 = vrot.slane %v853, 5
      %v856 = vsel %vm267, %v851, %v855
      %v857 = vshrl.u32 %v799, 16
      %v859 = vrot.slane %v857, 4
      %v860 = vor.u32 %v859, %v855
      %v861 = vrot.slane %v860, 4
      %v863 = vshll.u32 %v800, 16
      %v865 = vrot.slane %v863, 5
      %v866 = vsel %vm267, %v861, %v865
      %v868 = vshrl.u32 %v801, 16
      %v870 = vrot.slane %v868, 4
      %v871 = vshll.u32 %v801, 16
      %v873 = vrot.slane %v871, 5
      %v874 = vor.u32 %v870, %v873
      %v875 = vrot.slane %v874, 4
      %v877 = vshll.u32 %v802, 16
      %v879 = vrot.slane %v877, 5
      %v880 = vsel %vm267, %v875, %v879
      %v881 = vshrl.u32 %v802, 16
      %v883 = vrot.slane %v881, 4
      %v884 = vor.u32 %v883, %v879
      %v885 = vrot.slane %v884, 4
      %v887 = vshll.u32 %v803, 16
      %v889 = vrot.slane %v887, 5
      %v890 = vsel %vm267, %v885, %v889
      %v892 = vshrl.u32 %v804, 16
      %v894 = vrot.slane %v892, 4
      %v895 = vshll.u32 %v804, 16
      %v897 = vrot.slane %v895, 5
      %v898 = vor.u32 %v894, %v897
      %v899 = vrot.slane %v898, 4
      %v901 = vshll.u32 %v805, 16
      %v903 = vrot.slane %v901, 5
      %v904 = vsel %vm267, %v899, %v903
      %v905 = vshrl.u32 %v805, 16
      %v907 = vrot.slane %v905, 4
      %v908 = vor.u32 %v907, %v903
      %v909 = vrot.slane %v908, 4
      %v911 = vshll.u32 %v806, 16
      %v913 = vrot.slane %v911, 5
      %v914 = vsel %vm267, %v909, %v913
      %v916 = vshrl.u32 %v807, 16
      %v918 = vrot.slane %v916, 4
      %v919 = vshll.u32 %v807, 16
      %v921 = vrot.slane %v919, 5
      %v922 = vor.u32 %v918, %v921
      %v923 = vrot.slane %v922, 4
      %v925 = vshll.u32 %v808, 16
      %v927 = vrot.slane %v925, 5
      %v928 = vsel %vm267, %v923, %v927
      %v929 = vshrl.u32 %v808, 16
      %v931 = vrot.slane %v929, 4
      %v932 = vor.u32 %v931, %v927
      %v933 = vrot.slane %v932, 4
      %v935 = vshll.u32 %v809, 16
      %v937 = vrot.slane %v935, 5
      %v938 = vsel %vm267, %v933, %v937
      %v940 = vshrl.u32 %v810, 16
      %v942 = vrot.slane %v940, 4
      %v943 = vshll.u32 %v810, 16
      %v945 = vrot.slane %v943, 5
      %v946 = vor.u32 %v942, %v945
      %v947 = vrot.slane %v946, 4
      %v949 = vshll.u32 %v811, 16
      %v951 = vrot.slane %v949, 5
      %v952 = vsel %vm267, %v947, %v951
      %v953 = vshrl.u32 %v811, 16
      %v955 = vrot.slane %v953, 4
      %v956 = vor.u32 %v955, %v951
      %v957 = vrot.slane %v956, 4
      %v959 = vshll.u32 %v812, 16
      %v961 = vrot.slane %v959, 5
      %v962 = vsel %vm267, %v957, %v961
      %v964 = vshrl.u32 %v813, 16
      %v966 = vrot.slane %v964, 4
      %v967 = vshll.u32 %v813, 16
      %v969 = vrot.slane %v967, 5
      %v970 = vor.u32 %v966, %v969
      %v971 = vrot.slane %v970, 4
      %v973 = vshll.u32 %v814, 16
      %v975 = vrot.slane %v973, 5
      %v976 = vsel %vm267, %v971, %v975
      %v977 = vshrl.u32 %v814, 16
      %v979 = vrot.slane %v977, 4
      %v980 = vor.u32 %v979, %v975
      %v981 = vrot.slane %v980, 4
      %v983 = vshll.u32 %v815, 16
      %v985 = vrot.slane %v983, 5
      %v986 = vsel %vm267, %v981, %v985
      %v988 = vshrl.u32 %v816, 16
      %v990 = vrot.slane %v988, 4
      %v991 = vshll.u32 %v816, 16
      %v993 = vrot.slane %v991, 5
      %v994 = vor.u32 %v990, %v993
      %v995 = vrot.slane %v994, 4
      %v997 = vshll.u32 %v817, 16
      %v999 = vrot.slane %v997, 5
      %v1000 = vsel %vm267, %v995, %v999
      %v1001 = vshrl.u32 %v817, 16
      %v1003 = vrot.slane %v1001, 4
      %v1004 = vor.u32 %v1003, %v999
      %v1005 = vrot.slane %v1004, 4
      %v1007 = vshll.u32 %v818, 16
      %v1009 = vrot.slane %v1007, 5
      %v1010 = vsel %vm267, %v1005, %v1009
      %1011 = vrot.lane.b32.xlu0 %v832, 16
      %v1012 = vpop.permute.xlu0 %1011
      %1013 = vrot.lane.b32.xlu0 %v842, 16
      %v1014 = vpop.permute.xlu0 %1013
      %1015 = vrot.lane.b32.xlu0 %v856, 16
      %v1016 = vpop.permute.xlu0 %1015
      %1017 = vrot.lane.b32.xlu0 %v866, 16
      %v1018 = vpop.permute.xlu0 %1017
      %1019 = vrot.lane.b32.xlu0 %v880, 16
      %v1020 = vpop.permute.xlu0 %1019
      %1021 = vrot.lane.b32.xlu0 %v890, 16
      %v1022 = vpop.permute.xlu0 %1021
      %1023 = vrot.lane.b32.xlu0 %v904, 16
      %v1024 = vpop.permute.xlu0 %1023
      %1025 = vrot.lane.b32.xlu0 %v914, 16
      %v1026 = vpop.permute.xlu0 %1025
      %1027 = vrot.lane.b32.xlu0 %v928, 16
      %v1028 = vpop.permute.xlu0 %1027
      %1029 = vrot.lane.b32.xlu0 %v938, 16
      %v1030 = vpop.permute.xlu0 %1029
      %1031 = vrot.lane.b32.xlu0 %v952, 16
      %v1032 = vpop.permute.xlu0 %1031
      %1033 = vrot.lane.b32.xlu0 %v962, 16
      %v1034 = vpop.permute.xlu0 %1033
      %1035 = vrot.lane.b32.xlu0 %v976, 16
      %v1036 = vpop.permute.xlu0 %1035
      %1037 = vrot.lane.b32.xlu0 %v986, 16
      %v1038 = vpop.permute.xlu0 %1037
      %1039 = vrot.lane.b32.xlu0 %v1000, 16
      %v1040 = vpop.permute.xlu0 %1039
      %1041 = vrot.lane.b32.xlu0 %v1010, 16
      %v1042 = vpop.permute.xlu0 %1041
      %vm1059 = vcmask 158848
      %1060 = vst.msk [vmem:[#allocation2] sm:$0xf] %vm1059, %v1012
      %1061 = vst.msk [vmem:[#allocation2 + $0x4] sm:$0xf] %vm1059, %v1014
      %1062 = vst.msk [vmem:[#allocation2 + $0x8] sm:$0xf] %vm1059, %v1016
      %1063 = vst.msk [vmem:[#allocation2 + $0xc] sm:$0xf] %vm1059, %v1018
      %1064 = vst.msk [vmem:[#allocation2 + $0x10] sm:$0xf] %vm1059, %v1020
      %1065 = vst.msk [vmem:[#allocation2 + $0x14] sm:$0xf] %vm1059, %v1022
      %1066 = vst.msk [vmem:[#allocation2 + $0x18] sm:$0xf] %vm1059, %v1024
      %1067 = vst.msk [vmem:[#allocation2 + $0x1c] sm:$0xf] %vm1059, %v1026
      %1068 = vst.msk [vmem:[#allocation2 + $0x20] sm:$0xf] %vm1059, %v1028
      %1069 = vst.msk [vmem:[#allocation2 + $0x24] sm:$0xf] %vm1059, %v1030
      %1070 = vst.msk [vmem:[#allocation2 + $0x28] sm:$0xf] %vm1059, %v1032
      %1071 = vst.msk [vmem:[#allocation2 + $0x2c] sm:$0xf] %vm1059, %v1034
      %1072 = vst.msk [vmem:[#allocation2 + $0x30] sm:$0xf] %vm1059, %v1036
      %1073 = vst.msk [vmem:[#allocation2 + $0x34] sm:$0xf] %vm1059, %v1038
      %1074 = vst.msk [vmem:[#allocation2 + $0x38] sm:$0xf] %vm1059, %v1040
      %1075 = vst.msk [vmem:[#allocation2 + $0x3c] sm:$0xf] %vm1059, %v1042
      %v1076 = vld [vmem:[%s697] sm:$0xe]
      %v1077 = vld [vmem:[%s697 + $0x4] sm:$0xf]
      %v1078 = vld [vmem:[%s697 + $0x8] sm:$0x1]
      %v1079 = vld [vmem:[%s697 + $0xc] sm:$0xe]
      %v1080 = vld [vmem:[%s697 + $0x10] sm:$0xf]
      %v1081 = vld [vmem:[%s697 + $0x14] sm:$0x1]
      %v1082 = vld [vmem:[%s697 + $0x18] sm:$0xe]
      %v1083 = vld [vmem:[%s697 + $0x1c] sm:$0xf]
      %v1084 = vld [vmem:[%s697 + $0x20] sm:$0x1]
      %v1085 = vld [vmem:[%s697 + $0x24] sm:$0xe]
      %v1086 = vld [vmem:[%s697 + $0x28] sm:$0xf]
      %v1087 = vld [vmem:[%s697 + $0x2c] sm:$0x1]
      %v1088 = vld [vmem:[%s697 + $0x30] sm:$0xe]
      %v1089 = vld [vmem:[%s697 + $0x34] sm:$0xf]
      %v1090 = vld [vmem:[%s697 + $0x38] sm:$0x1]
      %v1091 = vld [vmem:[%s697 + $0x3c] sm:$0xe]
      %v1092 = vld [vmem:[%s697 + $0x40] sm:$0xf]
      %v1093 = vld [vmem:[%s697 + $0x44] sm:$0x1]
      %v1094 = vld [vmem:[%s697 + $0x48] sm:$0xe]
      %v1095 = vld [vmem:[%s697 + $0x4c] sm:$0xf]
      %v1096 = vld [vmem:[%s697 + $0x50] sm:$0x1]
      %v1097 = vld [vmem:[%s697 + $0x54] sm:$0xe]
      %v1098 = vld [vmem:[%s697 + $0x58] sm:$0xf]
      %v1099 = vld [vmem:[%s697 + $0x5c] sm:$0x1]
      %v1124 = vrot.slane %v1076, 5
      %v1125 = vrot.slane %v1124, 4
      %v1126 = vrot.slane %v1077, 5
      %v1127 = vsel %vm575, %v1125, %v1126
      %v1128 = vrot.slane %v1126, 4
      %v1129 = vrot.slane %v1078, 5
      %v1130 = vsel %vm575, %v1128, %v1129
      %v1131 = vrot.slane %v1079, 5
      %v1132 = vrot.slane %v1131, 4
      %v1133 = vrot.slane %v1080, 5
      %v1134 = vsel %vm575, %v1132, %v1133
      %v1135 = vrot.slane %v1133, 4
      %v1136 = vrot.slane %v1081, 5
      %v1137 = vsel %vm575, %v1135, %v1136
      %v1138 = vrot.slane %v1082, 5
      %v1139 = vrot.slane %v1138, 4
      %v1140 = vrot.slane %v1083, 5
      %v1141 = vsel %vm575, %v1139, %v1140
      %v1142 = vrot.slane %v1140, 4
      %v1143 = vrot.slane %v1084, 5
      %v1144 = vsel %vm575, %v1142, %v1143
      %v1145 = vrot.slane %v1085, 5
      %v1146 = vrot.slane %v1145, 4
      %v1147 = vrot.slane %v1086, 5
      %v1148 = vsel %vm575, %v1146, %v1147
      %v1149 = vrot.slane %v1147, 4
      %v1150 = vrot.slane %v1087, 5
      %v1151 = vsel %vm575, %v1149, %v1150
      %v1152 = vrot.slane %v1088, 5
      %v1153 = vrot.slane %v1152, 4
      %v1154 = vrot.slane %v1089, 5
      %v1155 = vsel %vm575, %v1153, %v1154
      %v1156 = vrot.slane %v1154, 4
      %v1157 = vrot.slane %v1090, 5
      %v1158 = vsel %vm575, %v1156, %v1157
      %v1159 = vrot.slane %v1091, 5
      %v1160 = vrot.slane %v1159, 4
      %v1161 = vrot.slane %v1092, 5
      %v1162 = vsel %vm575, %v1160, %v1161
      %v1163 = vrot.slane %v1161, 4
      %v1164 = vrot.slane %v1093, 5
      %v1165 = vsel %vm575, %v1163, %v1164
      %v1166 = vrot.slane %v1094, 5
      %v1167 = vrot.slane %v1166, 4
      %v1168 = vrot.slane %v1095, 5
      %v1169 = vsel %vm575, %v1167, %v1168
      %v1170 = vrot.slane %v1168, 4
      %v1171 = vrot.slane %v1096, 5
      %v1172 = vsel %vm575, %v1170, %v1171
      %v1173 = vrot.slane %v1097, 5
      %v1174 = vrot.slane %v1173, 4
      %v1175 = vrot.slane %v1098, 5
      %v1176 = vsel %vm575, %v1174, %v1175
      %v1177 = vrot.slane %v1175, 4
      %v1178 = vrot.slane %v1099, 5
      %v1179 = vsel %vm575, %v1177, %v1178
      %1180 = vrot.lane.b32.xlu0 %v1127, 20
      %v1181 = vpop.permute.xlu0 %1180
      %1182 = vrot.lane.b32.xlu0 %v1130, 20
      %v1183 = vpop.permute.xlu0 %1182
      %1184 = vrot.lane.b32.xlu0 %v1134, 20
      %v1185 = vpop.permute.xlu0 %1184
      %1186 = vrot.lane.b32.xlu0 %v1137, 20
      %v1187 = vpop.permute.xlu0 %1186
      %1188 = vrot.lane.b32.xlu0 %v1141, 20
      %v1189 = vpop.permute.xlu0 %1188
      %1190 = vrot.lane.b32.xlu0 %v1144, 20
      %v1191 = vpop.permute.xlu0 %1190
      %1192 = vrot.lane.b32.xlu0 %v1148, 20
      %v1193 = vpop.permute.xlu0 %1192
      %1194 = vrot.lane.b32.xlu0 %v1151, 20
      %v1195 = vpop.permute.xlu0 %1194
      %1196 = vrot.lane.b32.xlu0 %v1155, 20
      %v1197 = vpop.permute.xlu0 %1196
      %1198 = vrot.lane.b32.xlu0 %v1158, 20
      %v1199 = vpop.permute.xlu0 %1198
      %1200 = vrot.lane.b32.xlu0 %v1162, 20
      %v1201 = vpop.permute.xlu0 %1200
      %1202 = vrot.lane.b32.xlu0 %v1165, 20
      %v1203 = vpop.permute.xlu0 %1202
      %1204 = vrot.lane.b32.xlu0 %v1169, 20
      %v1205 = vpop.permute.xlu0 %1204
      %1206 = vrot.lane.b32.xlu0 %v1172, 20
      %v1207 = vpop.permute.xlu0 %1206
      %1208 = vrot.lane.b32.xlu0 %v1176, 20
      %v1209 = vpop.permute.xlu0 %1208
      %1210 = vrot.lane.b32.xlu0 %v1179, 20
      %v1211 = vpop.permute.xlu0 %1210
      %vm1228 = vcmask 191648
      %1229 = vst.msk [vmem:[#allocation2] sm:$0xf] %vm1228, %v1181
      %1230 = vst.msk [vmem:[#allocation2 + $0x4] sm:$0xf] %vm1228, %v1183
      %1231 = vst.msk [vmem:[#allocation2 + $0x8] sm:$0xf] %vm1228, %v1185
      %1232 = vst.msk [vmem:[#allocation2 + $0xc] sm:$0xf] %vm1228, %v1187
      %1233 = vst.msk [vmem:[#allocation2 + $0x10] sm:$0xf] %vm1228, %v1189
      %1234 = vst.msk [vmem:[#allocation2 + $0x14] sm:$0xf] %vm1228, %v1191
      %1235 = vst.msk [vmem:[#allocation2 + $0x18] sm:$0xf] %vm1228, %v1193
      %1236 = vst.msk [vmem:[#allocation2 + $0x1c] sm:$0xf] %vm1228, %v1195
      %1237 = vst.msk [vmem:[#allocation2 + $0x20] sm:$0xf] %vm1228, %v1197
      %1238 = vst.msk [vmem:[#allocation2 + $0x24] sm:$0xf] %vm1228, %v1199
      %1239 = vst.msk [vmem:[#allocation2 + $0x28] sm:$0xf] %vm1228, %v1201
      %1240 = vst.msk [vmem:[#allocation2 + $0x2c] sm:$0xf] %vm1228, %v1203
      %1241 = vst.msk [vmem:[#allocation2 + $0x30] sm:$0xf] %vm1228, %v1205
      %1242 = vst.msk [vmem:[#allocation2 + $0x34] sm:$0xf] %vm1228, %v1207
      %1243 = vst.msk [vmem:[#allocation2 + $0x38] sm:$0xf] %vm1228, %v1209
      %1244 = vst.msk [vmem:[#allocation2 + $0x3c] sm:$0xf] %vm1228, %v1211
      %s1245 = scalar_lea.vmem %s197, 24
      %v1246 = vld [vmem:[%s1245] sm:$0xf]
      %v1247 = vld [vmem:[%s1245 + $0x4] sm:$0xf]
      %v1248 = vld [vmem:[%s1245 + $0xc] sm:$0xf]
      %v1249 = vld [vmem:[%s1245 + $0x10] sm:$0xf]
      %v1250 = vld [vmem:[%s1245 + $0x18] sm:$0xf]
      %v1251 = vld [vmem:[%s1245 + $0x1c] sm:$0xf]
      %v1252 = vld [vmem:[%s1245 + $0x24] sm:$0xf]
      %v1253 = vld [vmem:[%s1245 + $0x28] sm:$0xf]
      %v1254 = vld [vmem:[%s1245 + $0x30] sm:$0xf]
      %v1255 = vld [vmem:[%s1245 + $0x34] sm:$0xf]
      %v1256 = vld [vmem:[%s1245 + $0x3c] sm:$0xf]
      %v1257 = vld [vmem:[%s1245 + $0x40] sm:$0xf]
      %v1258 = vld [vmem:[%s1245 + $0x48] sm:$0xf]
      %v1259 = vld [vmem:[%s1245 + $0x4c] sm:$0xf]
      %v1260 = vld [vmem:[%s1245 + $0x54] sm:$0xf]
      %v1261 = vld [vmem:[%s1245 + $0x58] sm:$0xf]
      %1278 = vrot.lane.b32.xlu0 %v1246, 24
      %v1279 = vpop.permute.xlu0 %1278
      %1280 = vrot.lane.b32.xlu0 %v1247, 24
      %v1281 = vpop.permute.xlu0 %1280
      %1282 = vrot.lane.b32.xlu0 %v1248, 24
      %v1283 = vpop.permute.xlu0 %1282
      %1284 = vrot.lane.b32.xlu0 %v1249, 24
      %v1285 = vpop.permute.xlu0 %1284
      %1286 = vrot.lane.b32.xlu0 %v1250, 24
      %v1287 = vpop.permute.xlu0 %1286
      %1288 = vrot.lane.b32.xlu0 %v1251, 24
      %v1289 = vpop.permute.xlu0 %1288
      %1290 = vrot.lane.b32.xlu0 %v1252, 24
      %v1291 = vpop.permute.xlu0 %1290
      %1292 = vrot.lane.b32.xlu0 %v1253, 24
      %v1293 = vpop.permute.xlu0 %1292
      %1294 = vrot.lane.b32.xlu0 %v1254, 24
      %v1295 = vpop.permute.xlu0 %1294
      %1296 = vrot.lane.b32.xlu0 %v1255, 24
      %v1297 = vpop.permute.xlu0 %1296
      %1298 = vrot.lane.b32.xlu0 %v1256, 24
      %v1299 = vpop.permute.xlu0 %1298
      %1300 = vrot.lane.b32.xlu0 %v1257, 24
      %v1301 = vpop.permute.xlu0 %1300
      %1302 = vrot.lane.b32.xlu0 %v1258, 24
      %v1303 = vpop.permute.xlu0 %1302
      %1304 = vrot.lane.b32.xlu0 %v1259, 24
      %v1305 = vpop.permute.xlu0 %1304
      %1306 = vrot.lane.b32.xlu0 %v1260, 24
      %v1307 = vpop.permute.xlu0 %1306
      %1308 = vrot.lane.b32.xlu0 %v1261, 24
      %v1309 = vpop.permute.xlu0 %1308
      %vm1326 = vcmask 224448
      %1327 = vst.msk [vmem:[#allocation2] sm:$0xf] %vm1326, %v1279
      %1328 = vst.msk [vmem:[#allocation2 + $0x4] sm:$0xf] %vm1326, %v1281
      %1329 = vst.msk [vmem:[#allocation2 + $0x8] sm:$0xf] %vm1326, %v1283
      %1330 = vst.msk [vmem:[#allocation2 + $0xc] sm:$0xf] %vm1326, %v1285
      %1331 = vst.msk [vmem:[#allocation2 + $0x10] sm:$0xf] %vm1326, %v1287
      %1332 = vst.msk [vmem:[#allocation2 + $0x14] sm:$0xf] %vm1326, %v1289
      %1333 = vst.msk [vmem:[#allocation2 + $0x18] sm:$0xf] %vm1326, %v1291
      %1334 = vst.msk [vmem:[#allocation2 + $0x1c] sm:$0xf] %vm1326, %v1293
      %1335 = vst.msk [vmem:[#allocation2 + $0x20] sm:$0xf] %vm1326, %v1295
      %1336 = vst.msk [vmem:[#allocation2 + $0x24] sm:$0xf] %vm1326, %v1297
      %1337 = vst.msk [vmem:[#allocation2 + $0x28] sm:$0xf] %vm1326, %v1299
      %1338 = vst.msk [vmem:[#allocation2 + $0x2c] sm:$0xf] %vm1326, %v1301
      %1339 = vst.msk [vmem:[#allocation2 + $0x30] sm:$0xf] %vm1326, %v1303
      %1340 = vst.msk [vmem:[#allocation2 + $0x34] sm:$0xf] %vm1326, %v1305
      %1341 = vst.msk [vmem:[#allocation2 + $0x38] sm:$0xf] %vm1326, %v1307
      %1342 = vst.msk [vmem:[#allocation2 + $0x3c] sm:$0xf] %vm1326, %v1309
      %v1343 = vld [vmem:[%s1245] sm:$0xf]
      %v1344 = vld [vmem:[%s1245 + $0x4] sm:$0xf]
      %v1345 = vld [vmem:[%s1245 + $0x8] sm:$0x1]
      %v1346 = vld [vmem:[%s1245 + $0xc] sm:$0xf]
      %v1347 = vld [vmem:[%s1245 + $0x10] sm:$0xf]
      %v1348 = vld [vmem:[%s1245 + $0x14] sm:$0x1]
      %v1349 = vld [vmem:[%s1245 + $0x18] sm:$0xf]
      %v1350 = vld [vmem:[%s1245 + $0x1c] sm:$0xf]
      %v1351 = vld [vmem:[%s1245 + $0x20] sm:$0x1]
      %v1352 = vld [vmem:[%s1245 + $0x24] sm:$0xf]
      %v1353 = vld [vmem:[%s1245 + $0x28] sm:$0xf]
      %v1354 = vld [vmem:[%s1245 + $0x2c] sm:$0x1]
      %v1355 = vld [vmem:[%s1245 + $0x30] sm:$0xf]
      %v1356 = vld [vmem:[%s1245 + $0x34] sm:$0xf]
      %v1357 = vld [vmem:[%s1245 + $0x38] sm:$0x1]
      %v1358 = vld [vmem:[%s1245 + $0x3c] sm:$0xf]
      %v1359 = vld [vmem:[%s1245 + $0x40] sm:$0xf]
      %v1360 = vld [vmem:[%s1245 + $0x44] sm:$0x1]
      %v1361 = vld [vmem:[%s1245 + $0x48] sm:$0xf]
      %v1362 = vld [vmem:[%s1245 + $0x4c] sm:$0xf]
      %v1363 = vld [vmem:[%s1245 + $0x50] sm:$0x1]
      %v1364 = vld [vmem:[%s1245 + $0x54] sm:$0xf]
      %v1365 = vld [vmem:[%s1245 + $0x58] sm:$0xf]
      %v1366 = vld [vmem:[%s1245 + $0x5c] sm:$0x1]
      %v1368 = vshrl.u32 %v1343, 16
      %v1370 = vrot.slane %v1368, 4
      %v1371 = vshll.u32 %v1343, 16
      %v1373 = vrot.slane %v1371, 5
      %v1374 = vor.u32 %v1370, %v1373
      %v1375 = vrot.slane %v1374, 4
      %v1377 = vshll.u32 %v1344, 16
      %v1379 = vrot.slane %v1377, 5
      %v1380 = vsel %vm267, %v1375, %v1379
      %v1381 = vshrl.u32 %v1344, 16
      %v1383 = vrot.slane %v1381, 4
      %v1384 = vor.u32 %v1383, %v1379
      %v1385 = vrot.slane %v1384, 4
      %v1387 = vshll.u32 %v1345, 16
      %v1389 = vrot.slane %v1387, 5
      %v1390 = vsel %vm267, %v1385, %v1389
      %v1392 = vshrl.u32 %v1346, 16
      %v1394 = vrot.slane %v1392, 4
      %v1395 = vshll.u32 %v1346, 16
      %v1397 = vrot.slane %v1395, 5
      %v1398 = vor.u32 %v1394, %v1397
      %v1399 = vrot.slane %v1398, 4
      %v1401 = vshll.u32 %v1347, 16
      %v1403 = vrot.slane %v1401, 5
      %v1404 = vsel %vm267, %v1399, %v1403
      %v1405 = vshrl.u32 %v1347, 16
      %v1407 = vrot.slane %v1405, 4
      %v1408 = vor.u32 %v1407, %v1403
      %v1409 = vrot.slane %v1408, 4
      %v1411 = vshll.u32 %v1348, 16
      %v1413 = vrot.slane %v1411, 5
      %v1414 = vsel %vm267, %v1409, %v1413
      %v1416 = vshrl.u32 %v1349, 16
      %v1418 = vrot.slane %v1416, 4
      %v1419 = vshll.u32 %v1349, 16
      %v1421 = vrot.slane %v1419, 5
      %v1422 = vor.u32 %v1418, %v1421
      %v1423 = vrot.slane %v1422, 4
      %v1425 = vshll.u32 %v1350, 16
      %v1427 = vrot.slane %v1425, 5
      %v1428 = vsel %vm267, %v1423, %v1427
      %v1429 = vshrl.u32 %v1350, 16
      %v1431 = vrot.slane %v1429, 4
      %v1432 = vor.u32 %v1431, %v1427
      %v1433 = vrot.slane %v1432, 4
      %v1435 = vshll.u32 %v1351, 16
      %v1437 = vrot.slane %v1435, 5
      %v1438 = vsel %vm267, %v1433, %v1437
      %v1440 = vshrl.u32 %v1352, 16
      %v1442 = vrot.slane %v1440, 4
      %v1443 = vshll.u32 %v1352, 16
      %v1445 = vrot.slane %v1443, 5
      %v1446 = vor.u32 %v1442, %v1445
      %v1447 = vrot.slane %v1446, 4
      %v1449 = vshll.u32 %v1353, 16
      %v1451 = vrot.slane %v1449, 5
      %v1452 = vsel %vm267, %v1447, %v1451
      %v1453 = vshrl.u32 %v1353, 16
      %v1455 = vrot.slane %v1453, 4
      %v1456 = vor.u32 %v1455, %v1451
      %v1457 = vrot.slane %v1456, 4
      %v1459 = vshll.u32 %v1354, 16
      %v1461 = vrot.slane %v1459, 5
      %v1462 = vsel %vm267, %v1457, %v1461
      %v1464 = vshrl.u32 %v1355, 16
      %v1466 = vrot.slane %v1464, 4
      %v1467 = vshll.u32 %v1355, 16
      %v1469 = vrot.slane %v1467, 5
      %v1470 = vor.u32 %v1466, %v1469
      %v1471 = vrot.slane %v1470, 4
      %v1473 = vshll.u32 %v1356, 16
      %v1475 = vrot.slane %v1473, 5
      %v1476 = vsel %vm267, %v1471, %v1475
      %v1477 = vshrl.u32 %v1356, 16
      %v1479 = vrot.slane %v1477, 4
      %v1480 = vor.u32 %v1479, %v1475
      %v1481 = vrot.slane %v1480, 4
      %v1483 = vshll.u32 %v1357, 16
      %v1485 = vrot.slane %v1483, 5
      %v1486 = vsel %vm267, %v1481, %v1485
      %v1488 = vshrl.u32 %v1358, 16
      %v1490 = vrot.slane %v1488, 4
      %v1491 = vshll.u32 %v1358, 16
      %v1493 = vrot.slane %v1491, 5
      %v1494 = vor.u32 %v1490, %v1493
      %v1495 = vrot.slane %v1494, 4
      %v1497 = vshll.u32 %v1359, 16
      %v1499 = vrot.slane %v1497, 5
      %v1500 = vsel %vm267, %v1495, %v1499
      %v1501 = vshrl.u32 %v1359, 16
      %v1503 = vrot.slane %v1501, 4
      %v1504 = vor.u32 %v1503, %v1499
      %v1505 = vrot.slane %v1504, 4
      %v1507 = vshll.u32 %v1360, 16
      %v1509 = vrot.slane %v1507, 5
      %v1510 = vsel %vm267, %v1505, %v1509
      %v1512 = vshrl.u32 %v1361, 16
      %v1514 = vrot.slane %v1512, 4
      %v1515 = vshll.u32 %v1361, 16
      %v1517 = vrot.slane %v1515, 5
      %v1518 = vor.u32 %v1514, %v1517
      %v1519 = vrot.slane %v1518, 4
      %v1521 = vshll.u32 %v1362, 16
      %v1523 = vrot.slane %v1521, 5
      %v1524 = vsel %vm267, %v1519, %v1523
      %v1525 = vshrl.u32 %v1362, 16
      %v1527 = vrot.slane %v1525, 4
      %v1528 = vor.u32 %v1527, %v1523
      %v1529 = vrot.slane %v1528, 4
      %v1531 = vshll.u32 %v1363, 16
      %v1533 = vrot.slane %v1531, 5
      %v1534 = vsel %vm267, %v1529, %v1533
      %v1536 = vshrl.u32 %v1364, 16
      %v1538 = vrot.slane %v1536, 4
      %v1539 = vshll.u32 %v1364, 16
      %v1541 = vrot.slane %v1539, 5
      %v1542 = vor.u32 %v1538, %v1541
      %v1543 = vrot.slane %v1542, 4
      %v1545 = vshll.u32 %v1365, 16
      %v1547 = vrot.slane %v1545, 5
      %v1548 = vsel %vm267, %v1543, %v1547
      %v1549 = vshrl.u32 %v1365, 16
      %v1551 = vrot.slane %v1549, 4
      %v1552 = vor.u32 %v1551, %v1547
      %v1553 = vrot.slane %v1552, 4
      %v1555 = vshll.u32 %v1366, 16
      %v1557 = vrot.slane %v1555, 5
      %v1558 = vsel %vm267, %v1553, %v1557
      %1559 = vrot.lane.b32.xlu0 %v1380, 28
      %v1560 = vpop.permute.xlu0 %1559
      %1561 = vrot.lane.b32.xlu0 %v1390, 28
      %v1562 = vpop.permute.xlu0 %1561
      %1563 = vrot.lane.b32.xlu0 %v1404, 28
      %v1564 = vpop.permute.xlu0 %1563
      %1565 = vrot.lane.b32.xlu0 %v1414, 28
      %v1566 = vpop.permute.xlu0 %1565
      %1567 = vrot.lane.b32.xlu0 %v1428, 28
      %v1568 = vpop.permute.xlu0 %1567
      %1569 = vrot.lane.b32.xlu0 %v1438, 28
      %v1570 = vpop.permute.xlu0 %1569
      %1571 = vrot.lane.b32.xlu0 %v1452, 28
      %v1572 = vpop.permute.xlu0 %1571
      %1573 = vrot.lane.b32.xlu0 %v1462, 28
      %v1574 = vpop.permute.xlu0 %1573
      %1575 = vrot.lane.b32.xlu0 %v1476, 28
      %v1576 = vpop.permute.xlu0 %1575
      %1577 = vrot.lane.b32.xlu0 %v1486, 28
      %v1578 = vpop.permute.xlu0 %1577
      %1579 = vrot.lane.b32.xlu0 %v1500, 28
      %v1580 = vpop.permute.xlu0 %1579
      %1581 = vrot.lane.b32.xlu0 %v1510, 28
      %v1582 = vpop.permute.xlu0 %1581
      %1583 = vrot.lane.b32.xlu0 %v1524, 28
      %v1584 = vpop.permute.xlu0 %1583
      %1585 = vrot.lane.b32.xlu0 %v1534, 28
      %v1586 = vpop.permute.xlu0 %1585
      %1587 = vrot.lane.b32.xlu0 %v1548, 28
      %v1588 = vpop.permute.xlu0 %1587
      %1589 = vrot.lane.b32.xlu0 %v1558, 28
      %v1590 = vpop.permute.xlu0 %1589
      %vm1607 = vcmask 257248
      %1608 = vst.msk [vmem:[#allocation2] sm:$0xf] %vm1607, %v1560
      %1609 = vst.msk [vmem:[#allocation2 + $0x4] sm:$0xf] %vm1607, %v1562
      %1610 = vst.msk [vmem:[#allocation2 + $0x8] sm:$0xf] %vm1607, %v1564
      %1611 = vst.msk [vmem:[#allocation2 + $0xc] sm:$0xf] %vm1607, %v1566
      %1612 = vst.msk [vmem:[#allocation2 + $0x10] sm:$0xf] %vm1607, %v1568
      %1613 = vst.msk [vmem:[#allocation2 + $0x14] sm:$0xf] %vm1607, %v1570
      %1614 = vst.msk [vmem:[#allocation2 + $0x18] sm:$0xf] %vm1607, %v1572
      %1615 = vst.msk [vmem:[#allocation2 + $0x1c] sm:$0xf] %vm1607, %v1574
      %1616 = vst.msk [vmem:[#allocation2 + $0x20] sm:$0xf] %vm1607, %v1576
      %1617 = vst.msk [vmem:[#allocation2 + $0x24] sm:$0xf] %vm1607, %v1578
      %1618 = vst.msk [vmem:[#allocation2 + $0x28] sm:$0xf] %vm1607, %v1580
      %1619 = vst.msk [vmem:[#allocation2 + $0x2c] sm:$0xf] %vm1607, %v1582
      %1620 = vst.msk [vmem:[#allocation2 + $0x30] sm:$0xf] %vm1607, %v1584
      %1621 = vst.msk [vmem:[#allocation2 + $0x34] sm:$0xf] %vm1607, %v1586
      %1622 = vst.msk [vmem:[#allocation2 + $0x38] sm:$0xf] %vm1607, %v1588
      %1623 = vst.msk [vmem:[#allocation2 + $0x3c] sm:$0xf] %vm1607, %v1590
      %v1624 = vld [vmem:[%s1245] sm:$0xe]
      %v1625 = vld [vmem:[%s1245 + $0x4] sm:$0xf]
      %v1626 = vld [vmem:[%s1245 + $0x8] sm:$0x1]
      %v1627 = vld [vmem:[%s1245 + $0xc] sm:$0xe]
      %v1628 = vld [vmem:[%s1245 + $0x10] sm:$0xf]
      %v1629 = vld [vmem:[%s1245 + $0x14] sm:$0x1]
      %v1630 = vld [vmem:[%s1245 + $0x18] sm:$0xe]
      %v1631 = vld [vmem:[%s1245 + $0x1c] sm:$0xf]
      %v1632 = vld [vmem:[%s1245 + $0x20] sm:$0x1]
      %v1633 = vld [vmem:[%s1245 + $0x24] sm:$0xe]
      %v1634 = vld [vmem:[%s1245 + $0x28] sm:$0xf]
      %v1635 = vld [vmem:[%s1245 + $0x2c] sm:$0x1]
      %v1636 = vld [vmem:[%s1245 + $0x30] sm:$0xe]
      %v1637 = vld [vmem:[%s1245 + $0x34] sm:$0xf]
      %v1638 = vld [vmem:[%s1245 + $0x38] sm:$0x1]
      %v1639 = vld [vmem:[%s1245 + $0x3c] sm:$0xe]
      %v1640 = vld [vmem:[%s1245 + $0x40] sm:$0xf]
      %v1641 = vld [vmem:[%s1245 + $0x44] sm:$0x1]
      %v1642 = vld [vmem:[%s1245 + $0x48] sm:$0xe]
      %v1643 = vld [vmem:[%s1245 + $0x4c] sm:$0xf]
      %v1644 = vld [vmem:[%s1245 + $0x50] sm:$0x1]
      %v1645 = vld [vmem:[%s1245 + $0x54] sm:$0xe]
      %v1646 = vld [vmem:[%s1245 + $0x58] sm:$0xf]
      %v1647 = vld [vmem:[%s1245 + $0x5c] sm:$0x1]
      %v1672 = vrot.slane %v1624, 5
      %v1673 = vrot.slane %v1672, 4
      %v1674 = vrot.slane %v1625, 5
      %v1675 = vsel %vm575, %v1673, %v1674
      %v1676 = vrot.slane %v1674, 4
      %v1677 = vrot.slane %v1626, 5
      %v1678 = vsel %vm575, %v1676, %v1677
      %v1679 = vrot.slane %v1627, 5
      %v1680 = vrot.slane %v1679, 4
      %v1681 = vrot.slane %v1628, 5
      %v1682 = vsel %vm575, %v1680, %v1681
      %v1683 = vrot.slane %v1681, 4
      %v1684 = vrot.slane %v1629, 5
      %v1685 = vsel %vm575, %v1683, %v1684
      %v1686 = vrot.slane %v1630, 5
      %v1687 = vrot.slane %v1686, 4
      %v1688 = vrot.slane %v1631, 5
      %v1689 = vsel %vm575, %v1687, %v1688
      %v1690 = vrot.slane %v1688, 4
      %v1691 = vrot.slane %v1632, 5
      %v1692 = vsel %vm575, %v1690, %v1691
      %v1693 = vrot.slane %v1633, 5
      %v1694 = vrot.slane %v1693, 4
      %v1695 = vrot.slane %v1634, 5
      %v1696 = vsel %vm575, %v1694, %v1695
      %v1697 = vrot.slane %v1695, 4
      %v1698 = vrot.slane %v1635, 5
      %v1699 = vsel %vm575, %v1697, %v1698
      %v1700 = vrot.slane %v1636, 5
      %v1701 = vrot.slane %v1700, 4
      %v1702 = vrot.slane %v1637, 5
      %v1703 = vsel %vm575, %v1701, %v1702
      %v1704 = vrot.slane %v1702, 4
      %v1705 = vrot.slane %v1638, 5
      %v1706 = vsel %vm575, %v1704, %v1705
      %v1707 = vrot.slane %v1639, 5
      %v1708 = vrot.slane %v1707, 4
      %v1709 = vrot.slane %v1640, 5
      %v1710 = vsel %vm575, %v1708, %v1709
      %v1711 = vrot.slane %v1709, 4
      %v1712 = vrot.slane %v1641, 5
      %v1713 = vsel %vm575, %v1711, %v1712
      %v1714 = vrot.slane %v1642, 5
      %v1715 = vrot.slane %v1714, 4
      %v1716 = vrot.slane %v1643, 5
      %v1717 = vsel %vm575, %v1715, %v1716
      %v1718 = vrot.slane %v1716, 4
      %v1719 = vrot.slane %v1644, 5
      %v1720 = vsel %vm575, %v1718, %v1719
      %v1721 = vrot.slane %v1645, 5
      %v1722 = vrot.slane %v1721, 4
      %v1723 = vrot.slane %v1646, 5
      %v1724 = vsel %vm575, %v1722, %v1723
      %v1725 = vrot.slane %v1723, 4
      %v1726 = vrot.slane %v1647, 5
      %v1727 = vsel %vm575, %v1725, %v1726
      %1728 = vrot.lane.b32.xlu0 %v1675, 32
      %v1729 = vpop.permute.xlu0 %1728
      %1730 = vrot.lane.b32.xlu0 %v1678, 32
      %v1731 = vpop.permute.xlu0 %1730
      %1732 = vrot.lane.b32.xlu0 %v1682, 32
      %v1733 = vpop.permute.xlu0 %1732
      %1734 = vrot.lane.b32.xlu0 %v1685, 32
      %v1735 = vpop.permute.xlu0 %1734
      %1736 = vrot.lane.b32.xlu0 %v1689, 32
      %v1737 = vpop.permute.xlu0 %1736
      %1738 = vrot.lane.b32.xlu0 %v1692, 32
      %v1739 = vpop.permute.xlu0 %1738
      %1740 = vrot.lane.b32.xlu0 %v1696, 32
      %v1741 = vpop.permute.xlu0 %1740
      %1742 = vrot.lane.b32.xlu0 %v1699, 32
      %v1743 = vpop.permute.xlu0 %1742
      %1744 = vrot.lane.b32.xlu0 %v1703, 32
      %v1745 = vpop.permute.xlu0 %1744
      %1746 = vrot.lane.b32.xlu0 %v1706, 32
      %v1747 = vpop.permute.xlu0 %1746
      %1748 = vrot.lane.b32.xlu0 %v1710, 32
      %v1749 = vpop.permute.xlu0 %1748
      %1750 = vrot.lane.b32.xlu0 %v1713, 32
      %v1751 = vpop.permute.xlu0 %1750
      %1752 = vrot.lane.b32.xlu0 %v1717, 32
      %v1753 = vpop.permute.xlu0 %1752
      %1754 = vrot.lane.b32.xlu0 %v1720, 32
      %v1755 = vpop.permute.xlu0 %1754
      %1756 = vrot.lane.b32.xlu0 %v1724, 32
      %v1757 = vpop.permute.xlu0 %1756
      %1758 = vrot.lane.b32.xlu0 %v1727, 32
      %v1759 = vpop.permute.xlu0 %1758
      %vm1776 = vcmask 290048
      %1777 = vst.msk [vmem:[#allocation2] sm:$0xf] %vm1776, %v1729
      %1778 = vst.msk [vmem:[#allocation2 + $0x4] sm:$0xf] %vm1776, %v1731
      %1779 = vst.msk [vmem:[#allocation2 + $0x8] sm:$0xf] %vm1776, %v1733
      %1780 = vst.msk [vmem:[#allocation2 + $0xc] sm:$0xf] %vm1776, %v1735
      %1781 = vst.msk [vmem:[#allocation2 + $0x10] sm:$0xf] %vm1776, %v1737
      %1782 = vst.msk [vmem:[#allocation2 + $0x14] sm:$0xf] %vm1776, %v1739
      %1783 = vst.msk [vmem:[#allocation2 + $0x18] sm:$0xf] %vm1776, %v1741
      %1784 = vst.msk [vmem:[#allocation2 + $0x1c] sm:$0xf] %vm1776, %v1743
      %1785 = vst.msk [vmem:[#allocation2 + $0x20] sm:$0xf] %vm1776, %v1745
      %1786 = vst.msk [vmem:[#allocation2 + $0x24] sm:$0xf] %vm1776, %v1747
      %1787 = vst.msk [vmem:[#allocation2 + $0x28] sm:$0xf] %vm1776, %v1749
      %1788 = vst.msk [vmem:[#allocation2 + $0x2c] sm:$0xf] %vm1776, %v1751
      %1789 = vst.msk [vmem:[#allocation2 + $0x30] sm:$0xf] %vm1776, %v1753
      %1790 = vst.msk [vmem:[#allocation2 + $0x34] sm:$0xf] %vm1776, %v1755
      %1791 = vst.msk [vmem:[#allocation2 + $0x38] sm:$0xf] %vm1776, %v1757
      %1792 = vst.msk [vmem:[#allocation2 + $0x3c] sm:$0xf] %vm1776, %v1759
      %v1793 = vld [vmem:[%s1] sm:$0xf]
      %v1794 = vld [vmem:[%s1 + $0x4] sm:$0xf]
      %v1795 = vld [vmem:[%s1 + $0x8] sm:$0xf]
      %v1796 = vld [vmem:[%s1 + $0xc] sm:$0xf]
      %v1797 = vld [vmem:[%s1 + $0x10] sm:$0x3]
      %v1798 = vld [vmem:[%s2] sm:$0x1]
      %v1799 = vld [vmem:[#allocation2] sm:$0xf]
      %v1800 = vld [vmem:[#allocation2 + $0x4] sm:$0xf]
      %v1801 = vld [vmem:[#allocation2 + $0x8] sm:$0xf]
      %v1802 = vld [vmem:[#allocation2 + $0xc] sm:$0xf]
      %v1803 = vld [vmem:[#allocation2 + $0x10] sm:$0xf]
      %v1804 = vld [vmem:[#allocation2 + $0x14] sm:$0xf]
      %v1805 = vld [vmem:[#allocation2 + $0x18] sm:$0xf]
      %v1806 = vld [vmem:[#allocation2 + $0x1c] sm:$0xf]
      %v1807 = vld [vmem:[#allocation2 + $0x20] sm:$0xf]
      %v1808 = vld [vmem:[#allocation2 + $0x24] sm:$0xf]
      %v1809 = vld [vmem:[#allocation2 + $0x28] sm:$0xf]
      %v1810 = vld [vmem:[#allocation2 + $0x2c] sm:$0xf]
      %v1811 = vld [vmem:[#allocation2 + $0x30] sm:$0xf]
      %v1812 = vld [vmem:[#allocation2 + $0x34] sm:$0xf]
      %v1813 = vld [vmem:[#allocation2 + $0x38] sm:$0xf]
      %v1814 = vld [vmem:[#allocation2 + $0x3c] sm:$0xf]
      %v1816 = vlaneseq
      %v1817 = vshrl.u32 %v1816, 7
      %v1818 = vsub.s32 0, %v1817
      %v1819 = vrot.slane %v1798, %v1818
      %v1837 = vunpack.c.l.b16 %v1799
      %v1838 = vunpack.c.l.b16 %v1800
      %v1839 = vunpack.c.l.b16 %v1801
      %v1840 = vunpack.c.l.b16 %v1802
      %v1841 = vunpack.c.l.b16 %v1803
      %v1842 = vunpack.c.l.b16 %v1804
      %v1843 = vunpack.c.l.b16 %v1805
      %v1844 = vunpack.c.l.b16 %v1806
      %v1845 = vunpack.c.l.b16 %v1807
      %v1846 = vunpack.c.l.b16 %v1808
      %v1847 = vunpack.c.l.b16 %v1809
      %v1848 = vunpack.c.l.b16 %v1810
      %v1849 = vunpack.c.l.b16 %v1811
      %v1850 = vunpack.c.l.b16 %v1812
      %v1851 = vunpack.c.l.b16 %v1813
      %v1852 = vunpack.c.l.b16 %v1814
      %v1853 = vpack.c.b16 %v1838, %v1837
      %v1854 = vpack.c.b16 %v1840, %v1839
      %v1855 = vpack.c.b16 %v1842, %v1841
      %v1856 = vpack.c.b16 %v1844, %v1843
      %v1857 = vpack.c.b16 %v1846, %v1845
      %v1858 = vpack.c.b16 %v1848, %v1847
      %v1859 = vpack.c.b16 %v1850, %v1849
      %v1860 = vpack.c.b16 %v1852, %v1851
      %v1866 = vunpack.c.l.b16 %v1793
      %v1867 = vunpack.c.l.b16 %v1794
      %v1868 = vunpack.c.l.b16 %v1795
      %v1869 = vunpack.c.l.b16 %v1796
      %v1870 = vunpack.c.l.b16 %v1797
      %v1871 = vpack.c.b16 %v1867, %v1866
      %v1872 = vpack.c.b16 %v1869, %v1868
      %v1873 = vpack.c.b16 %v1870, %v1870
      %vm1876 = vcmask 293888
      %v1878 = vsel %vm1876, %v1853, 0
      %v1881 = vsel %vm1876, %v1854, 0
      %v1884 = vsel %vm1876, %v1855, 0
      %v1887 = vsel %vm1876, %v1856, 0
      %v1890 = vsel %vm1876, %v1857, 0
      %v1893 = vsel %vm1876, %v1858, 0
      %v1896 = vsel %vm1876, %v1859, 0
      %v1899 = vsel %vm1876, %v1860, 0
      %vm1901 = vcmask 1041408
      %v1903 = vsel %vm1901, %v1873, 0
      %1905 = vmatprep.subr.bf16.mxu0 0
      %1906 = vmatpush1.bf16.msra.mxu0 0
      %1907 = vmatprep.subr.bf16.mxu0 0
      %1908 = vmatpush1.bf16.msra.mxu0 0
      %1909 = vmatprep.subr.bf16.mxu0 0
      %1910 = vmatpush1.bf16.msra.mxu0 0
      %1911 = vmatprep.subr.bf16.mxu0 0
      %1912 = vmatpush1.bf16.msra.mxu0 0
      %1913 = vmatprep.subr.bf16.mxu0 0
      %1914 = vmatpush1.bf16.msra.mxu0 0
      %1915 = vmatprep.subr.bf16.mxu0 0
      %1916 = vmatpush1.bf16.msra.mxu0 %v1903
      %1917 = vmatprep.subr.bf16.mxu0 0
      %1918 = vmatpush1.bf16.msra.mxu0 %v1872
      %1919 = vmatprep.subr.bf16.mxu0 0
      %1920 = vmatpush1.bf16.msra.mxu0 %v1871
      %1921 = vmatprep.subr.bf16.mxu0 0
      %1922 = vmatpush2.bf16.msra.mxu0 0
      %1923 = vmatprep.subr.bf16.mxu0 0
      %1924 = vmatpush2.bf16.msra.mxu0 0
      %1925 = vmatprep.subr.bf16.mxu0 0
      %1926 = vmatpush2.bf16.msra.mxu0 0
      %1927 = vmatprep.subr.bf16.mxu0 0
      %1928 = vmatpush2.bf16.msra.mxu0 0
      %1929 = vmatprep.subr.bf16.mxu0 0
      %1930 = vmatpush2.bf16.msra.mxu0 0
      %1931 = vmatprep.subr.bf16.mxu0 0
      %1932 = vmatpush2.bf16.msra.mxu0 0
      %1933 = vmatprep.subr.bf16.mxu0 0
      %1934 = vmatpush2.bf16.msra.mxu0 0
      %1935 = vmatprep.subr.bf16.mxu0 0
      %1936 = vmatpush2.bf16.msra.mxu0 0
      %1937 = vmatprep.mubr.bf16.mxu0 0
      %1938 = vmatmul.mubr.bf16.gmra.mxu0 %v1878
      %v1939 = vpop.f32.mrf.mxu0
      %v1940 = vadd.f32 %v1819, %v1939
      %v1941 = vpop.f32.mrf.mxu0
      %v1942 = vpop.f32.mrf.mxu0
      %v1943 = vadd.f32 %v1819, %v1942
      %v1944 = vpop.f32.mrf.mxu0
      %1945 = vmatprep.mubr.bf16.mxu0 0
      %1946 = vmatmul.mubr.bf16.gmra.mxu0 %v1881
      %v1947 = vpop.f32.mrf.mxu0
      %v1948 = vadd.f32 %v1819, %v1947
      %v1949 = vpop.f32.mrf.mxu0
      %v1950 = vpop.f32.mrf.mxu0
      %v1951 = vadd.f32 %v1819, %v1950
      %v1952 = vpop.f32.mrf.mxu0
      %1953 = vmatprep.mubr.bf16.mxu0 0
      %1954 = vmatmul.mubr.bf16.gmra.mxu0 %v1884
      %v1955 = vpop.f32.mrf.mxu0
      %v1956 = vadd.f32 %v1819, %v1955
      %v1957 = vpop.f32.mrf.mxu0
      %v1958 = vpop.f32.mrf.mxu0
      %v1959 = vadd.f32 %v1819, %v1958
      %v1960 = vpop.f32.mrf.mxu0
      %1961 = vmatprep.mubr.bf16.mxu0 0
      %1962 = vmatmul.mubr.bf16.gmra.mxu0 %v1887
      %v1963 = vpop.f32.mrf.mxu0
      %v1964 = vadd.f32 %v1819, %v1963
      %v1965 = vpop.f32.mrf.mxu0
      %v1966 = vpop.f32.mrf.mxu0
      %v1967 = vadd.f32 %v1819, %v1966
      %v1968 = vpop.f32.mrf.mxu0
      %1969 = vmatprep.mubr.bf16.mxu0 0
      %1970 = vmatmul.mubr.bf16.gmra.mxu0 %v1890
      %v1971 = vpop.f32.mrf.mxu0
      %v1972 = vadd.f32 %v1819, %v1971
      %v1973 = vpop.f32.mrf.mxu0
      %v1974 = vpop.f32.mrf.mxu0
      %v1975 = vadd.f32 %v1819, %v1974
      %v1976 = vpop.f32.mrf.mxu0
      %1977 = vmatprep.mubr.bf16.mxu0 0
      %1978 = vmatmul.mubr.bf16.gmra.mxu0 %v1893
      %v1979 = vpop.f32.mrf.mxu0
      %v1980 = vadd.f32 %v1819, %v1979
      %v1981 = vpop.f32.mrf.mxu0
      %v1982 = vpop.f32.mrf.mxu0
      %v1983 = vadd.f32 %v1819, %v1982
      %v1984 = vpop.f32.mrf.mxu0
      %1985 = vmatprep.mubr.bf16.mxu0 0
      %1986 = vmatmul.mubr.bf16.gmra.mxu0 %v1896
      %v1987 = vpop.f32.mrf.mxu0
      %v1988 = vadd.f32 %v1819, %v1987
      %v1989 = vpop.f32.mrf.mxu0
      %v1990 = vpop.f32.mrf.mxu0
      %v1991 = vadd.f32 %v1819, %v1990
      %v1992 = vpop.f32.mrf.mxu0
      %1993 = vmatprep.mubr.bf16.mxu0 0
      %1994 = vmatmul.mubr.bf16.gmra.mxu0 %v1899
      %v1995 = vpop.f32.mrf.mxu0
      %v1996 = vadd.f32 %v1819, %v1995
      %v1997 = vpop.f32.mrf.mxu0
      %v1998 = vpop.f32.mrf.mxu0
      %v1999 = vadd.f32 %v1819, %v1998
      %v2000 = vpop.f32.mrf.mxu0
      %2001 = vdwg.mxu0
      %v2002 = vpack.c.bf16 %v1943, %v1940
      %v2003 = vpack.c.bf16 %v1951, %v1948
      %v2004 = vpack.c.bf16 %v1959, %v1956
      %v2005 = vpack.c.bf16 %v1967, %v1964
      %v2006 = vpack.c.bf16 %v1975, %v1972
      %v2007 = vpack.c.bf16 %v1983, %v1980
      %v2008 = vpack.c.bf16 %v1991, %v1988
      %v2009 = vpack.c.bf16 %v1999, %v1996
      %v2018 = vunpack.c.l.b16 %v2002
      %v2019 = vunpack.c.h.b16 %v2002
      %v2020 = vunpack.c.l.b16 %v2003
      %v2021 = vunpack.c.h.b16 %v2003
      %v2022 = vunpack.c.l.b16 %v2004
      %v2023 = vunpack.c.h.b16 %v2004
      %v2024 = vunpack.c.l.b16 %v2005
      %v2025 = vunpack.c.h.b16 %v2005
      %v2026 = vunpack.c.l.b16 %v2006
      %v2027 = vunpack.c.h.b16 %v2006
      %v2028 = vunpack.c.l.b16 %v2007
      %v2029 = vunpack.c.h.b16 %v2007
      %v2030 = vunpack.c.l.b16 %v2008
      %v2031 = vunpack.c.h.b16 %v2008
      %v2032 = vunpack.c.l.b16 %v2009
      %v2033 = vunpack.c.h.b16 %v2009
      %v2034 = vpack.c.b16 %v2018, %v2018
      %v2035 = vpack.c.b16 %v2019, %v2019
      %v2036 = vpack.c.b16 %v2020, %v2020
      %v2037 = vpack.c.b16 %v2021, %v2021
      %v2038 = vpack.c.b16 %v2022, %v2022
      %v2039 = vpack.c.b16 %v2023, %v2023
      %v2040 = vpack.c.b16 %v2024, %v2024
      %v2041 = vpack.c.b16 %v2025, %v2025
      %v2042 = vpack.c.b16 %v2026, %v2026
      %v2043 = vpack.c.b16 %v2027, %v2027
      %v2044 = vpack.c.b16 %v2028, %v2028
      %v2045 = vpack.c.b16 %v2029, %v2029
      %v2046 = vpack.c.b16 %v2030, %v2030
      %v2047 = vpack.c.b16 %v2031, %v2031
      %v2048 = vpack.c.b16 %v2032, %v2032
      %v2049 = vpack.c.b16 %v2033, %v2033
      %2066 = vst [vmem:[%s206] sm:$0xf] %v2034
      %2067 = vst [vmem:[%s206 + $0x4] sm:$0xf] %v2035
      %2068 = vst [vmem:[%s206 + $0x8] sm:$0xf] %v2036
      %2069 = vst [vmem:[%s206 + $0xc] sm:$0xf] %v2037
      %2070 = vst [vmem:[%s206 + $0x10] sm:$0xf] %v2038
      %2071 = vst [vmem:[%s206 + $0x14] sm:$0xf] %v2039
      %2072 = vst [vmem:[%s206 + $0x18] sm:$0xf] %v2040
      %2073 = vst [vmem:[%s206 + $0x1c] sm:$0xf] %v2041
      %2074 = vst [vmem:[%s206 + $0x20] sm:$0xf] %v2042
      %2075 = vst [vmem:[%s206 + $0x24] sm:$0xf] %v2043
      %2076 = vst [vmem:[%s206 + $0x28] sm:$0xf] %v2044
      %2077 = vst [vmem:[%s206 + $0x2c] sm:$0xf] %v2045
      %2078 = vst [vmem:[%s206 + $0x30] sm:$0xf] %v2046
      %2079 = vst [vmem:[%s206 + $0x34] sm:$0xf] %v2047
      %2080 = vst [vmem:[%s206 + $0x38] sm:$0xf] %v2048
      %2081 = vst [vmem:[%s206 + $0x3c] sm:$0xf] %v2049
      %p2082 = scmp.lt.s32.totalorder %s18, 1
      %s2083 = scalar_select %p2082, %s18, 1
      %p2084 = scmp.lt.s32.totalorder %s19, 1
      %s2085 = scalar_select %p2084, %s19, 1
      %s2086 = smul.addr %s2085, 16
      %s2087 = smul.addr %s2083, 32
      %s2088 = sadd.s32 %s2086, %s2087
      %s2089 = smul.addr %s2088, 4
      %s2090 = scalar_lea.vmem %s3, %s2089
      // Predicated region
      $region33: #{conv_layer_forward.1} parent=31 // pred_check
        %p2091 = pneg %p116
      $region34: #{conv_layer_forward.1} parent=31 // pred_check_branch
        %2093 = sbr.rel (%p2091) target = $region36
      $region35: #{conv_layer_forward.1} parent=31 // pred_region
        _
      $region36: #{conv_layer_forward.1} parent=31 // pred_fallthru
        _
    $region32: #{conv_layer_forward.1} parent=5 // pred_fallthru
      _
    %p2094 = scmp.le.s32.totalorder 2, %s9
    // Predicated region
    $region37: #{conv_layer_forward.1} parent=5 // pred_check
      %p2095 = pneg %p2094
    $region38: #{conv_layer_forward.1} parent=5 // pred_check_branch
      %2097 = sbr.rel (%p2095) target = $region40
    $region39: #{conv_layer_forward.1} parent=5 // pred_region
      %s2098 = ssub.s32 %s9, 2
      // Predicated region
      $region41: #{conv_layer_forward.1} parent=39 // pred_check
        %p2099 = pneg %p122
      $region42: #{conv_layer_forward.1} parent=39 // pred_check_branch
        %2101 = sbr.rel (%p2099) target = $region44
      $region43: #{conv_layer_forward.1} parent=39 // pred_region
        %p2102 = scmp.lt.s32.totalorder %s20, 1
        %s2103 = scalar_select %p2102, %s20, 1
        %p2104 = scmp.lt.s32.totalorder %s21, 1
        %s2105 = scalar_select %p2104, %s21, 1
        %s2106 = smul.addr %s2105, 16
        %s2107 = smul.addr %s2103, 32
        %s2108 = sadd.s32 %s2106, %s2107
        %s2109 = smul.addr %s2108, 4
        %s2110 = scalar_lea.vmem %s3, %s2109
      $region44: #{conv_layer_forward.1} parent=39 // pred_fallthru
        _
    $region40: #{conv_layer_forward.1} parent=5 // pred_fallthru
      _
  $region6: #{conv_layer_forward.1} parent=0 // loop_footer
    %s13 = sadd.s32 1, %s9
  $region7: #{conv_layer_forward.1} parent=0 // loop_footer_branch
    %8 = sbr.rel target = $region3
  $region8: #{conv_layer_forward.1} parent=0 // loop_exit
    _

</llo_original>
